<compile_context>
chip_gen: v5e
topology: v5e:2x2
jax: 0.10.0
libtpu: 0.0.40
codegen_flags: <defaults>
</compile_context>

<pallas_src>
import functools

import jax
import jax.numpy as jnp
from jax import lax
from jax.experimental import pallas as pl
from jax.experimental.pallas import tpu as pltpu


# ---------------------------------------------------------------------------
# Fused kernel: conv1+ReLU -> conv2+ReLU -> flatten(C,H,W) -> FC1+ReLU -> FC2
# Single invocation; the whole batch is folded along the lane axis.
# ---------------------------------------------------------------------------
def _cnn_fused_kernel(rhs1_ref, mask_ref, w1s_ref, b1_ref, w2s_ref, b2_ref,
                      w1f_ref, bf1_ref, w2fc_ref, bf2_ref, o_ref,
                      rhs2_ref, h2_ref, lhsfc_ref,
                      *, n, wp, hpwp, wout, kw, ntaps, c1, c2):
    f32 = jnp.float32
    edge = wp + 1                     # zero margin when re-padding conv1 output

    # ---- conv1 (+bias+ReLU): ONE K-stacked matmul -------------------------
    # rhs1 (9*cin, wout) holds the 9 shifted input copies (built in wrapper).
    h1 = jnp.dot(w1s_ref[...], rhs1_ref[...], preferred_element_type=f32)
    h1 = jnp.maximum(h1 + b1_ref[...], 0.0) * mask_ref[...]   # junk cols -> 0

    # ---- re-embed conv1 output into the zero-padded flat layout as a VALUE
    #      (no scratch zero-fill / store->load round trip) ------------------
    zeros_edge = jnp.zeros((c1, edge), f32)
    a2 = jnp.concatenate([zeros_edge, h1, zeros_edge], axis=1)  # (c1, wout+2*edge)

    # ---- K-stack conv2's 9 taps into a VMEM staging buffer ----------------
    # Each block is 8-sublane aligned (c1 == 8), lane offset 0.
    for t in range(ntaps):
        off = (t // kw) * wp + (t % kw)
        rhs2_ref[t * c1:(t + 1) * c1, :] = a2[:, off:off + wout]

    # ---- conv2 (+bias+ReLU): ONE K-stacked matmul --------------------------
    h2 = jnp.dot(w2s_ref[...], rhs2_ref[...], preferred_element_type=f32)
    h2_ref[...] = jnp.maximum(h2 + b2_ref[...], 0.0)  # junk cols hit zero FC rows

    # ---- assemble FC1 LHS (n, c2*hpwp): row s = channel-major flatten of
    #      sample s in padded-flat coordinates (16 tiny static copies) ------
    for s in range(n):
        for c in range(c2):
            lhsfc_ref[pl.ds(s, 1), pl.ds(c * hpwp, hpwp)] = \
                h2_ref[pl.ds(c, 1), pl.ds(s * hpwp, hpwp)]

    # ---- FC1 (+ReLU): ONE contraction, K = c2*hpwp -------------------------
    fc1 = jnp.dot(lhsfc_ref[...], w1f_ref[...], preferred_element_type=f32)
    fc1 = jnp.maximum(fc1 + bf1_ref[...], 0.0)                 # (n, F1)

    # ---- FC2 (lane-padded to 128 in the wrapper): ONE lane-dense store -----
    o_ref[...] = (jnp.dot(fc1, w2fc_ref[...], preferred_element_type=f32)
                  + bf2_ref[...]).astype(o_ref.dtype)          # (n, 128)


# ---------------------------------------------------------------------------
# Wrapper: layout plumbing (cheap, done once in XLA) + single pallas_call
# ---------------------------------------------------------------------------
def cnn_forward(x_nchw, params):
    """Forward of CNN: conv3x3+ReLU x2 -> view(batch, C*H*W) -> FC+ReLU -> FC."""
    n, cin, h, w = x_nchw.shape
    kh, kw, cin_w, c1 = params["conv1_w"].shape
    _, _, c1_w, c2 = params["conv2_w"].shape
    assert cin == cin_w and c1 == c1_w and (kh, kw) == (3, 3)
    fc_in, f1 = params["fc1_w"].shape
    assert fc_in == c2 * h * w
    _, f2 = params["fc2_w"].shape

    hp, wp = h + 2, w + 2                 # "same" padding = 1 on each side
    hpwp = hp * wp                        # per-sample padded flat width (324)
    wout = n * hpwp                       # lane width of fused conv outputs (648)
    ntaps = kh * kw
    f2p = 128                             # lane-dense padded logits width
    f32 = jnp.float32

    # -- input: zero-pad, flatten, fold the batch along lanes, and pre-stack
    #    the 9 conv1 taps along K (pure layout plumbing, done by XLA) --------
    xpad = jnp.pad(x_nchw.astype(f32), ((0, 0), (0, 0), (1, 1), (1, 1)))
    xflat = xpad.reshape(n, cin, hpwp).transpose(1, 0, 2).reshape(cin, wout)
    xflat = jnp.pad(xflat, ((0, 0), (0, (kh - 1) * wp + (kw - 1))))  # tail zeros
    rhs1 = jnp.concatenate(
        [xflat[:, (dh * wp + dw):(dh * wp + dw) + wout]
         for dh in range(kh) for dw in range(kw)], axis=0)           # (9*cin, wout)

    # -- K-stacked conv weights: (c_out, 9*c_in), tap-major / channel-minor --
    w1s = params["conv1_w"].astype(f32).reshape(ntaps, cin, c1)
    w1s = w1s.transpose(2, 0, 1).reshape(c1, ntaps * cin)
    w2s = params["conv2_w"].astype(f32).reshape(ntaps, c1, c2)
    w2s = w2s.transpose(2, 0, 1).reshape(c2, ntaps * c1)
    b1 = params["conv1_b"].astype(f32).reshape(c1, 1)
    b2 = params["conv2_b"].astype(f32).reshape(c2, 1)

    # -- valid-column mask for the shift-and-accumulate layout ---------------
    p = jnp.arange(wout)
    q = p % hpwp
    mask = (((q % wp) < w) & ((q // wp) < h)).astype(f32).reshape(1, wout)

    # -- FC1 weights re-indexed to the padded flat layout and flattened over
    #    (channel, padded position): zero rows on padding/junk positions -----
    w1f = params["fc1_w"].astype(f32).reshape(c2, h, w, f1)
    w1f = jnp.pad(w1f, ((0, 0), (0, hp - h), (0, wp - w), (0, 0)))
    w1f = w1f.reshape(c2 * hpwp, f1)
    bf1 = params["fc1_b"].astype(f32).reshape(1, f1)

    # -- FC2 lane-padded to 128-wide output ----------------------------------
    w2fc = jnp.pad(params["fc2_w"].astype(f32), ((0, 0), (0, f2p - f2)))
    bf2 = jnp.pad(params["fc2_b"].astype(f32), (0, f2p - f2)).reshape(1, f2p)

    kernel = functools.partial(_cnn_fused_kernel, n=n, wp=wp, hpwp=hpwp,
                               wout=wout, kw=kw, ntaps=ntaps, c1=c1, c2=c2)

    out = pl.pallas_call(
        kernel,
        out_shape=jax.ShapeDtypeStruct((n, f2p), f32),
        grid_spec=pltpu.PrefetchScalarGridSpec(
            num_scalar_prefetch=0,
            grid=(1,),                    # whole batch in a single step
            in_specs=[
                pl.BlockSpec((ntaps * cin, wout), lambda i: (0, 0)),  # conv1 RHS
                pl.BlockSpec((1, wout), lambda i: (0, 0)),            # column mask
                pl.BlockSpec((c1, ntaps * cin), lambda i: (0, 0)),    # conv1 K-stacked W
                pl.BlockSpec((c1, 1), lambda i: (0, 0)),              # conv1 bias
                pl.BlockSpec((c2, ntaps * c1), lambda i: (0, 0)),     # conv2 K-stacked W
                pl.BlockSpec((c2, 1), lambda i: (0, 0)),              # conv2 bias
                pl.BlockSpec((c2 * hpwp, f1), lambda i: (0, 0)),      # fc1 W (re-indexed)
                pl.BlockSpec((1, f1), lambda i: (0, 0)),              # fc1 bias
                pl.BlockSpec((f1, f2p), lambda i: (0, 0)),            # fc2 W (lane-padded)
                pl.BlockSpec((1, f2p), lambda i: (0, 0)),             # fc2 bias
            ],
            out_specs=pl.BlockSpec((n, f2p), lambda i: (0, 0)),
            scratch_shapes=[
                pltpu.VMEM((ntaps * c1, wout), f32),   # conv2 K-stacked RHS staging
                pltpu.VMEM((c2, wout), f32),           # conv2 output staging
                pltpu.VMEM((n, c2 * hpwp), f32),       # FC1 LHS staging
            ],
        ),
        # Single grid step: weights are resident and single-use; "arbitrary"
        # is fine (on v7x an alternative is grid=(n,) with "parallel" to use
        # both TensorCores — benchmark if batch grows).
        compiler_params=pltpu.CompilerParams(
            dimension_semantics=("arbitrary",),
        ),
    )(rhs1, mask, w1s, b1, w2s, b2, w1f, bf1, w2fc, bf2)

    return out[:, :f2]


# ---------------------------------------------------------------------------
# Pure-JAX reference (correctness check only)
# ---------------------------------------------------------------------------
def reference_forward(x_nchw, params):
    x = jnp.transpose(x_nchw, (0, 2, 3, 1))

    def conv(x, w, b):
        y = lax.conv_general_dilated(
            x, w, window_strides=(1, 1), padding="SAME",
            dimension_numbers=("NHWC", "HWIO", "NHWC"))
        return jax.nn.relu(y + b)

    x = conv(x, params["conv1_w"], params["conv1_b"])
    x = conv(x, params["conv2_w"], params["conv2_b"])
    n, h, w, c = x.shape
    x = jnp.transpose(x, (0, 3, 1, 2)).reshape(n, c * h * w)   # torch (C,H,W) flatten
    x = jax.nn.relu(x @ params["fc1_w"] + params["fc1_b"])
    x = x @ params["fc2_w"] + params["fc2_b"]
    return x


def init_params(key):
    ks = jax.random.split(key, 8)
    s = 0.1
    return {
        "conv1_w": s * jax.random.normal(ks[0], (3, 3, 4, 8), jnp.float32),
        "conv1_b": s * jax.random.normal(ks[1], (8,), jnp.float32),
        "conv2_w": s * jax.random.normal(ks[2], (3, 3, 8, 8), jnp.float32),
        "conv2_b": s * jax.random.normal(ks[3], (8,), jnp.float32),
        "fc1_w": s * jax.random.normal(ks[4], (8 * 16 * 16, 32), jnp.float32),
        "fc1_b": s * jax.random.normal(ks[5], (32,), jnp.float32),
        "fc2_w": s * jax.random.normal(ks[6], (32, 10), jnp.float32),
        "fc2_b": s * jax.random.normal(ks[7], (10,), jnp.float32),
    }


if __name__ == "__main__":
    root = jax.random.PRNGKey(0)
    kparams, kx = jax.random.split(root)
    params = init_params(kparams)

    # batch=2, channels=4, spatial=16x16 (NCHW, like the PyTorch module)
    x = jax.random.normal(kx, (2, 4, 16, 16), jnp.float32)

    out = jax.block_until_ready(jax.jit(cnn_forward)(x, params))
    assert out.shape == (2, 10), out.shape

    ref = jax.block_until_ready(reference_forward(x, params))
    assert jnp.allclose(out, ref, atol=1e-3, rtol=1e-3), (
        "mismatch vs pure-JAX reference")

    print("KERNEL_OK")
</pallas_src>

<mosaic_0001>
module attributes {stable_mosaic.version = 11 : i64} {
  func.func @_cnn_fused_kernel(%arg0: i32, %arg1: memref<36x648xf32, #tpu.memory_space<vmem>>, %arg2: memref<1x648xf32, #tpu.memory_space<vmem>>, %arg3: memref<8x36xf32, #tpu.memory_space<vmem>>, %arg4: memref<8x1xf32, #tpu.memory_space<vmem>>, %arg5: memref<8x72xf32, #tpu.memory_space<vmem>>, %arg6: memref<8x1xf32, #tpu.memory_space<vmem>>, %arg7: memref<2592x32xf32, #tpu.memory_space<vmem>>, %arg8: memref<1x32xf32, #tpu.memory_space<vmem>>, %arg9: memref<32x128xf32, #tpu.memory_space<vmem>>, %arg10: memref<1x128xf32, #tpu.memory_space<vmem>>, %arg11: memref<2x128xf32, #tpu.memory_space<vmem>>, %arg12: memref<72x648xf32, #tpu.memory_space<vmem>>, %arg13: memref<8x648xf32, #tpu.memory_space<vmem>>, %arg14: memref<2x2592xf32, #tpu.memory_space<vmem>>) attributes {dimension_semantics = [#tpu.dimension_semantics<arbitrary>], iteration_bounds = array<i64: 1>, scalar_prefetch = 0 : i64, scratch_operands = 3 : i64, tpu.core_type = #tpu.core_type<tc>, window_params = [{pipeline_mode = #tpu.pipeline_mode<synchronous>, transform_indices = @transform_0, window_bounds = array<i64: 36, 648>}, {pipeline_mode = #tpu.pipeline_mode<synchronous>, transform_indices = @transform_1, window_bounds = array<i64: 1, 648>}, {pipeline_mode = #tpu.pipeline_mode<synchronous>, transform_indices = @transform_2, window_bounds = array<i64: 8, 36>}, {pipeline_mode = #tpu.pipeline_mode<synchronous>, transform_indices = @transform_3, window_bounds = array<i64: 8, 1>}, {pipeline_mode = #tpu.pipeline_mode<synchronous>, transform_indices = @transform_4, window_bounds = array<i64: 8, 72>}, {pipeline_mode = #tpu.pipeline_mode<synchronous>, transform_indices = @transform_5, window_bounds = array<i64: 8, 1>}, {pipeline_mode = #tpu.pipeline_mode<synchronous>, transform_indices = @transform_6, window_bounds = array<i64: 2592, 32>}, {pipeline_mode = #tpu.pipeline_mode<synchronous>, transform_indices = @transform_7, window_bounds = array<i64: 1, 32>}, {pipeline_mode = #tpu.pipeline_mode<synchronous>, transform_indices = @transform_8, window_bounds = array<i64: 32, 128>}, {pipeline_mode = #tpu.pipeline_mode<synchronous>, transform_indices = @transform_9, window_bounds = array<i64: 1, 128>}, {pipeline_mode = #tpu.pipeline_mode<synchronous>, transform_indices = @transform_10, window_bounds = array<i64: 2, 128>}]} {
    %c0 = arith.constant 0 : index
    %c0_0 = arith.constant 0 : index
    %0 = vector.load %arg3[%c0, %c0_0] : memref<8x36xf32, #tpu.memory_space<vmem>>, vector<8x36xf32>
    %c0_1 = arith.constant 0 : index
    %c0_2 = arith.constant 0 : index
    %1 = vector.load %arg1[%c0_1, %c0_2] : memref<36x648xf32, #tpu.memory_space<vmem>>, vector<36x648xf32>
    %cst = arith.constant dense<0.000000e+00> : vector<8x648xf32>
    %2 = tpu.matmul %0, %1, %cst {dimension_numbers = #tpu.dot_dimension_numbers<[1], [0], [0], [1], [0, 0, 1, 1], [], []>} : vector<8x36xf32>, vector<36x648xf32>, vector<8x648xf32> -> vector<8x648xf32>
    %c0_3 = arith.constant 0 : index
    %c0_4 = arith.constant 0 : index
    %3 = vector.load %arg4[%c0_3, %c0_4] : memref<8x1xf32, #tpu.memory_space<vmem>>, vector<8x1xf32>
    %4 = vector.broadcast %3 : vector<8x1xf32> to vector<8x648xf32>
    %5 = arith.addf %2, %4 : vector<8x648xf32>
    %cst_5 = arith.constant 0.000000e+00 : f32
    %6 = vector.broadcast %cst_5 : f32 to vector<8x648xf32>
    %7 = arith.maximumf %5, %6 : vector<8x648xf32>
    %c0_6 = arith.constant 0 : index
    %c0_7 = arith.constant 0 : index
    %8 = vector.load %arg2[%c0_6, %c0_7] : memref<1x648xf32, #tpu.memory_space<vmem>>, vector<1x648xf32>
    %9 = vector.broadcast %8 : vector<1x648xf32> to vector<8x648xf32>
    %10 = arith.mulf %7, %9 : vector<8x648xf32>
    %cst_8 = arith.constant 0.000000e+00 : f32
    %11 = vector.broadcast %cst_8 : f32 to vector<8x19xf32>
    %12 = tpu.concatenate %11, %10, %11 in 1 : vector<8x19xf32>, vector<8x648xf32>, vector<8x19xf32> -> vector<8x686xf32>
    %13 = vector.extract_strided_slice %12 {offsets = [0, 0], sizes = [8, 648], strides = [1, 1]} : vector<8x686xf32> to vector<8x648xf32>
    %c0_9 = arith.constant 0 : index
    %c0_10 = arith.constant 0 : index
    %14 = vector.load %arg12[%c0_9, %c0_10] : memref<72x648xf32, #tpu.memory_space<vmem>>, vector<8x648xf32>
    tpu.vector_store %arg12[%c0_9, %c0_10], %13 {strides = array<i32>} : memref<72x648xf32, #tpu.memory_space<vmem>>, vector<8x648xf32>,
    %15 = vector.extract_strided_slice %12 {offsets = [0, 1], sizes = [8, 648], strides = [1, 1]} : vector<8x686xf32> to vector<8x648xf32>
    %c8 = arith.constant 8 : index
    %c0_11 = arith.constant 0 : index
    %16 = vector.load %arg12[%c8, %c0_11] : memref<72x648xf32, #tpu.memory_space<vmem>>, vector<8x648xf32>
    tpu.vector_store %arg12[%c8, %c0_11], %15 {strides = array<i32>} : memref<72x648xf32, #tpu.memory_space<vmem>>, vector<8x648xf32>,
    %17 = vector.extract_strided_slice %12 {offsets = [0, 2], sizes = [8, 648], strides = [1, 1]} : vector<8x686xf32> to vector<8x648xf32>
    %c16 = arith.constant 16 : index
    %c0_12 = arith.constant 0 : index
    %18 = vector.load %arg12[%c16, %c0_12] : memref<72x648xf32, #tpu.memory_space<vmem>>, vector<8x648xf32>
    tpu.vector_store %arg12[%c16, %c0_12], %17 {strides = array<i32>} : memref<72x648xf32, #tpu.memory_space<vmem>>, vector<8x648xf32>,
    %19 = vector.extract_strided_slice %12 {offsets = [0, 18], sizes = [8, 648], strides = [1, 1]} : vector<8x686xf32> to vector<8x648xf32>
    %c24 = arith.constant 24 : index
    %c0_13 = arith.constant 0 : index
    %20 = vector.load %arg12[%c24, %c0_13] : memref<72x648xf32, #tpu.memory_space<vmem>>, vector<8x648xf32>
    tpu.vector_store %arg12[%c24, %c0_13], %19 {strides = array<i32>} : memref<72x648xf32, #tpu.memory_space<vmem>>, vector<8x648xf32>,
    %21 = vector.extract_strided_slice %12 {offsets = [0, 19], sizes = [8, 648], strides = [1, 1]} : vector<8x686xf32> to vector<8x648xf32>
    %c32 = arith.constant 32 : index
    %c0_14 = arith.constant 0 : index
    %22 = vector.load %arg12[%c32, %c0_14] : memref<72x648xf32, #tpu.memory_space<vmem>>, vector<8x648xf32>
    tpu.vector_store %arg12[%c32, %c0_14], %21 {strides = array<i32>} : memref<72x648xf32, #tpu.memory_space<vmem>>, vector<8x648xf32>,
    %23 = vector.extract_strided_slice %12 {offsets = [0, 20], sizes = [8, 648], strides = [1, 1]} : vector<8x686xf32> to vector<8x648xf32>
    %c40 = arith.constant 40 : index
    %c0_15 = arith.constant 0 : index
    %24 = vector.load %arg12[%c40, %c0_15] : memref<72x648xf32, #tpu.memory_space<vmem>>, vector<8x648xf32>
    tpu.vector_store %arg12[%c40, %c0_15], %23 {strides = array<i32>} : memref<72x648xf32, #tpu.memory_space<vmem>>, vector<8x648xf32>,
    %25 = vector.extract_strided_slice %12 {offsets = [0, 36], sizes = [8, 648], strides = [1, 1]} : vector<8x686xf32> to vector<8x648xf32>
    %c48 = arith.constant 48 : index
    %c0_16 = arith.constant 0 : index
    %26 = vector.load %arg12[%c48, %c0_16] : memref<72x648xf32, #tpu.memory_space<vmem>>, vector<8x648xf32>
    tpu.vector_store %arg12[%c48, %c0_16], %25 {strides = array<i32>} : memref<72x648xf32, #tpu.memory_space<vmem>>, vector<8x648xf32>,
    %27 = vector.extract_strided_slice %12 {offsets = [0, 37], sizes = [8, 648], strides = [1, 1]} : vector<8x686xf32> to vector<8x648xf32>
    %c56 = arith.constant 56 : index
    %c0_17 = arith.constant 0 : index
    %28 = vector.load %arg12[%c56, %c0_17] : memref<72x648xf32, #tpu.memory_space<vmem>>, vector<8x648xf32>
    tpu.vector_store %arg12[%c56, %c0_17], %27 {strides = array<i32>} : memref<72x648xf32, #tpu.memory_space<vmem>>, vector<8x648xf32>,
    %29 = vector.extract_strided_slice %12 {offsets = [0, 38], sizes = [8, 648], strides = [1, 1]} : vector<8x686xf32> to vector<8x648xf32>
    %c64 = arith.constant 64 : index
    %c0_18 = arith.constant 0 : index
    %30 = vector.load %arg12[%c64, %c0_18] : memref<72x648xf32, #tpu.memory_space<vmem>>, vector<8x648xf32>
    tpu.vector_store %arg12[%c64, %c0_18], %29 {strides = array<i32>} : memref<72x648xf32, #tpu.memory_space<vmem>>, vector<8x648xf32>,
    %c0_19 = arith.constant 0 : index
    %c0_20 = arith.constant 0 : index
    %31 = vector.load %arg5[%c0_19, %c0_20] : memref<8x72xf32, #tpu.memory_space<vmem>>, vector<8x72xf32>
    %c0_21 = arith.constant 0 : index
    %c0_22 = arith.constant 0 : index
    %32 = vector.load %arg12[%c0_21, %c0_22] : memref<72x648xf32, #tpu.memory_space<vmem>>, vector<72x648xf32>
    %cst_23 = arith.constant dense<0.000000e+00> : vector<8x648xf32>
    %33 = tpu.matmul %31, %32, %cst_23 {dimension_numbers = #tpu.dot_dimension_numbers<[1], [0], [0], [1], [0, 0, 1, 1], [], []>} : vector<8x72xf32>, vector<72x648xf32>, vector<8x648xf32> -> vector<8x648xf32>
    %c0_24 = arith.constant 0 : index
    %c0_25 = arith.constant 0 : index
    %34 = vector.load %arg6[%c0_24, %c0_25] : memref<8x1xf32, #tpu.memory_space<vmem>>, vector<8x1xf32>
    %35 = vector.broadcast %34 : vector<8x1xf32> to vector<8x648xf32>
    %36 = arith.addf %33, %35 : vector<8x648xf32>
    %cst_26 = arith.constant 0.000000e+00 : f32
    %37 = vector.broadcast %cst_26 : f32 to vector<8x648xf32>
    %38 = arith.maximumf %36, %37 : vector<8x648xf32>
    %c0_27 = arith.constant 0 : index
    %c0_28 = arith.constant 0 : index
    %39 = vector.load %arg13[%c0_27, %c0_28] : memref<8x648xf32, #tpu.memory_space<vmem>>, vector<8x648xf32>
    tpu.vector_store %arg13[%c0_27, %c0_28], %38 {strides = array<i32>} : memref<8x648xf32, #tpu.memory_space<vmem>>, vector<8x648xf32>,
    %c0_29 = arith.constant 0 : index
    %c0_30 = arith.constant 0 : index
    %40 = vector.load %arg13[%c0_29, %c0_30] : memref<8x648xf32, #tpu.memory_space<vmem>>, vector<1x324xf32>
    %c0_31 = arith.constant 0 : index
    %c0_32 = arith.constant 0 : index
    %41 = vector.load %arg14[%c0_31, %c0_32] : memref<2x2592xf32, #tpu.memory_space<vmem>>, vector<1x324xf32>
    tpu.vector_store %arg14[%c0_31, %c0_32], %40 {strides = array<i32>} : memref<2x2592xf32, #tpu.memory_space<vmem>>, vector<1x324xf32>,
    %c1 = arith.constant 1 : index
    %c0_33 = arith.constant 0 : index
    %42 = vector.load %arg13[%c1, %c0_33] : memref<8x648xf32, #tpu.memory_space<vmem>>, vector<1x324xf32>
    %c0_34 = arith.constant 0 : index
    %c324 = arith.constant 324 : index
    %43 = vector.load %arg14[%c0_34, %c324] : memref<2x2592xf32, #tpu.memory_space<vmem>>, vector<1x324xf32>
    tpu.vector_store %arg14[%c0_34, %c324], %42 {strides = array<i32>} : memref<2x2592xf32, #tpu.memory_space<vmem>>, vector<1x324xf32>,
    %c2 = arith.constant 2 : index
    %c0_35 = arith.constant 0 : index
    %44 = vector.load %arg13[%c2, %c0_35] : memref<8x648xf32, #tpu.memory_space<vmem>>, vector<1x324xf32>
    %c0_36 = arith.constant 0 : index
    %c648 = arith.constant 648 : index
    %45 = vector.load %arg14[%c0_36, %c648] : memref<2x2592xf32, #tpu.memory_space<vmem>>, vector<1x324xf32>
    tpu.vector_store %arg14[%c0_36, %c648], %44 {strides = array<i32>} : memref<2x2592xf32, #tpu.memory_space<vmem>>, vector<1x324xf32>,
    %c3 = arith.constant 3 : index
    %c0_37 = arith.constant 0 : index
    %46 = vector.load %arg13[%c3, %c0_37] : memref<8x648xf32, #tpu.memory_space<vmem>>, vector<1x324xf32>
    %c0_38 = arith.constant 0 : index
    %c972 = arith.constant 972 : index
    %47 = vector.load %arg14[%c0_38, %c972] : memref<2x2592xf32, #tpu.memory_space<vmem>>, vector<1x324xf32>
    tpu.vector_store %arg14[%c0_38, %c972], %46 {strides = array<i32>} : memref<2x2592xf32, #tpu.memory_space<vmem>>, vector<1x324xf32>,
    %c4 = arith.constant 4 : index
    %c0_39 = arith.constant 0 : index
    %48 = vector.load %arg13[%c4, %c0_39] : memref<8x648xf32, #tpu.memory_space<vmem>>, vector<1x324xf32>
    %c0_40 = arith.constant 0 : index
    %c1296 = arith.constant 1296 : index
    %49 = vector.load %arg14[%c0_40, %c1296] : memref<2x2592xf32, #tpu.memory_space<vmem>>, vector<1x324xf32>
    tpu.vector_store %arg14[%c0_40, %c1296], %48 {strides = array<i32>} : memref<2x2592xf32, #tpu.memory_space<vmem>>, vector<1x324xf32>,
    %c5 = arith.constant 5 : index
    %c0_41 = arith.constant 0 : index
    %50 = vector.load %arg13[%c5, %c0_41] : memref<8x648xf32, #tpu.memory_space<vmem>>, vector<1x324xf32>
    %c0_42 = arith.constant 0 : index
    %c1620 = arith.constant 1620 : index
    %51 = vector.load %arg14[%c0_42, %c1620] : memref<2x2592xf32, #tpu.memory_space<vmem>>, vector<1x324xf32>
    tpu.vector_store %arg14[%c0_42, %c1620], %50 {strides = array<i32>} : memref<2x2592xf32, #tpu.memory_space<vmem>>, vector<1x324xf32>,
    %c6 = arith.constant 6 : index
    %c0_43 = arith.constant 0 : index
    %52 = vector.load %arg13[%c6, %c0_43] : memref<8x648xf32, #tpu.memory_space<vmem>>, vector<1x324xf32>
    %c0_44 = arith.constant 0 : index
    %c1944 = arith.constant 1944 : index
    %53 = vector.load %arg14[%c0_44, %c1944] : memref<2x2592xf32, #tpu.memory_space<vmem>>, vector<1x324xf32>
    tpu.vector_store %arg14[%c0_44, %c1944], %52 {strides = array<i32>} : memref<2x2592xf32, #tpu.memory_space<vmem>>, vector<1x324xf32>,
    %c7 = arith.constant 7 : index
    %c0_45 = arith.constant 0 : index
    %54 = vector.load %arg13[%c7, %c0_45] : memref<8x648xf32, #tpu.memory_space<vmem>>, vector<1x324xf32>
    %c0_46 = arith.constant 0 : index
    %c2268 = arith.constant 2268 : index
    %55 = vector.load %arg14[%c0_46, %c2268] : memref<2x2592xf32, #tpu.memory_space<vmem>>, vector<1x324xf32>
    tpu.vector_store %arg14[%c0_46, %c2268], %54 {strides = array<i32>} : memref<2x2592xf32, #tpu.memory_space<vmem>>, vector<1x324xf32>,
    %c0_47 = arith.constant 0 : index
    %c324_48 = arith.constant 324 : index
    %56 = vector.load %arg13[%c0_47, %c324_48] : memref<8x648xf32, #tpu.memory_space<vmem>>, vector<1x324xf32>
    %c1_49 = arith.constant 1 : index
    %c0_50 = arith.constant 0 : index
    %57 = vector.load %arg14[%c1_49, %c0_50] : memref<2x2592xf32, #tpu.memory_space<vmem>>, vector<1x324xf32>
    tpu.vector_store %arg14[%c1_49, %c0_50], %56 {strides = array<i32>} : memref<2x2592xf32, #tpu.memory_space<vmem>>, vector<1x324xf32>,
    %c1_51 = arith.constant 1 : index
    %c324_52 = arith.constant 324 : index
    %58 = vector.load %arg13[%c1_51, %c324_52] : memref<8x648xf32, #tpu.memory_space<vmem>>, vector<1x324xf32>
    %c1_53 = arith.constant 1 : index
    %c324_54 = arith.constant 324 : index
    %59 = vector.load %arg14[%c1_53, %c324_54] : memref<2x2592xf32, #tpu.memory_space<vmem>>, vector<1x324xf32>
    tpu.vector_store %arg14[%c1_53, %c324_54], %58 {strides = array<i32>} : memref<2x2592xf32, #tpu.memory_space<vmem>>, vector<1x324xf32>,
    %c2_55 = arith.constant 2 : index
    %c324_56 = arith.constant 324 : index
    %60 = vector.load %arg13[%c2_55, %c324_56] : memref<8x648xf32, #tpu.memory_space<vmem>>, vector<1x324xf32>
    %c1_57 = arith.constant 1 : index
    %c648_58 = arith.constant 648 : index
    %61 = vector.load %arg14[%c1_57, %c648_58] : memref<2x2592xf32, #tpu.memory_space<vmem>>, vector<1x324xf32>
    tpu.vector_store %arg14[%c1_57, %c648_58], %60 {strides = array<i32>} : memref<2x2592xf32, #tpu.memory_space<vmem>>, vector<1x324xf32>,
    %c3_59 = arith.constant 3 : index
    %c324_60 = arith.constant 324 : index
    %62 = vector.load %arg13[%c3_59, %c324_60] : memref<8x648xf32, #tpu.memory_space<vmem>>, vector<1x324xf32>
    %c1_61 = arith.constant 1 : index
    %c972_62 = arith.constant 972 : index
    %63 = vector.load %arg14[%c1_61, %c972_62] : memref<2x2592xf32, #tpu.memory_space<vmem>>, vector<1x324xf32>
    tpu.vector_store %arg14[%c1_61, %c972_62], %62 {strides = array<i32>} : memref<2x2592xf32, #tpu.memory_space<vmem>>, vector<1x324xf32>,
    %c4_63 = arith.constant 4 : index
    %c324_64 = arith.constant 324 : index
    %64 = vector.load %arg13[%c4_63, %c324_64] : memref<8x648xf32, #tpu.memory_space<vmem>>, vector<1x324xf32>
    %c1_65 = arith.constant 1 : index
    %c1296_66 = arith.constant 1296 : index
    %65 = vector.load %arg14[%c1_65, %c1296_66] : memref<2x2592xf32, #tpu.memory_space<vmem>>, vector<1x324xf32>
    tpu.vector_store %arg14[%c1_65, %c1296_66], %64 {strides = array<i32>} : memref<2x2592xf32, #tpu.memory_space<vmem>>, vector<1x324xf32>,
    %c5_67 = arith.constant 5 : index
    %c324_68 = arith.constant 324 : index
    %66 = vector.load %arg13[%c5_67, %c324_68] : memref<8x648xf32, #tpu.memory_space<vmem>>, vector<1x324xf32>
    %c1_69 = arith.constant 1 : index
    %c1620_70 = arith.constant 1620 : index
    %67 = vector.load %arg14[%c1_69, %c1620_70] : memref<2x2592xf32, #tpu.memory_space<vmem>>, vector<1x324xf32>
    tpu.vector_store %arg14[%c1_69, %c1620_70], %66 {strides = array<i32>} : memref<2x2592xf32, #tpu.memory_space<vmem>>, vector<1x324xf32>,
    %c6_71 = arith.constant 6 : index
    %c324_72 = arith.constant 324 : index
    %68 = vector.load %arg13[%c6_71, %c324_72] : memref<8x648xf32, #tpu.memory_space<vmem>>, vector<1x324xf32>
    %c1_73 = arith.constant 1 : index
    %c1944_74 = arith.constant 1944 : index
    %69 = vector.load %arg14[%c1_73, %c1944_74] : memref<2x2592xf32, #tpu.memory_space<vmem>>, vector<1x324xf32>
    tpu.vector_store %arg14[%c1_73, %c1944_74], %68 {strides = array<i32>} : memref<2x2592xf32, #tpu.memory_space<vmem>>, vector<1x324xf32>,
    %c7_75 = arith.constant 7 : index
    %c324_76 = arith.constant 324 : index
    %70 = vector.load %arg13[%c7_75, %c324_76] : memref<8x648xf32, #tpu.memory_space<vmem>>, vector<1x324xf32>
    %c1_77 = arith.constant 1 : index
    %c2268_78 = arith.constant 2268 : index
    %71 = vector.load %arg14[%c1_77, %c2268_78] : memref<2x2592xf32, #tpu.memory_space<vmem>>, vector<1x324xf32>
    tpu.vector_store %arg14[%c1_77, %c2268_78], %70 {strides = array<i32>} : memref<2x2592xf32, #tpu.memory_space<vmem>>, vector<1x324xf32>,
    %c0_79 = arith.constant 0 : index
    %c0_80 = arith.constant 0 : index
    %72 = vector.load %arg14[%c0_79, %c0_80] : memref<2x2592xf32, #tpu.memory_space<vmem>>, vector<2x2592xf32>
    %c0_81 = arith.constant 0 : index
    %c0_82 = arith.constant 0 : index
    %73 = vector.load %arg7[%c0_81, %c0_82] : memref<2592x32xf32, #tpu.memory_space<vmem>>, vector<2592x32xf32>
    %cst_83 = arith.constant dense<0.000000e+00> : vector<2x32xf32>
    %74 = tpu.matmul %72, %73, %cst_83 {dimension_numbers = #tpu.dot_dimension_numbers<[1], [0], [0], [1], [0, 0, 1, 1], [], []>} : vector<2x2592xf32>, vector<2592x32xf32>, vector<2x32xf32> -> vector<2x32xf32>
    %c0_84 = arith.constant 0 : index
    %c0_85 = arith.constant 0 : index
    %75 = vector.load %arg8[%c0_84, %c0_85] : memref<1x32xf32, #tpu.memory_space<vmem>>, vector<1x32xf32>
    %76 = vector.broadcast %75 : vector<1x32xf32> to vector<2x32xf32>
    %77 = arith.addf %74, %76 : vector<2x32xf32>
    %cst_86 = arith.constant 0.000000e+00 : f32
    %78 = vector.broadcast %cst_86 : f32 to vector<2x32xf32>
    %79 = arith.maximumf %77, %78 : vector<2x32xf32>
    %c0_87 = arith.constant 0 : index
    %c0_88 = arith.constant 0 : index
    %80 = vector.load %arg9[%c0_87, %c0_88] : memref<32x128xf32, #tpu.memory_space<vmem>>, vector<32x128xf32>
    %cst_89 = arith.constant dense<0.000000e+00> : vector<2x128xf32>
    %81 = tpu.matmul %79, %80, %cst_89 {dimension_numbers = #tpu.dot_dimension_numbers<[1], [0], [0], [1], [0, 0, 1, 1], [], []>} : vector<2x32xf32>, vector<32x128xf32>, vector<2x128xf32> -> vector<2x128xf32>
    %c0_90 = arith.constant 0 : index
    %c0_91 = arith.constant 0 : index
    %82 = vector.load %arg10[%c0_90, %c0_91] : memref<1x128xf32, #tpu.memory_space<vmem>>, vector<1x128xf32>
    %83 = vector.broadcast %82 : vector<1x128xf32> to vector<2x128xf32>
    %84 = arith.addf %81, %83 : vector<2x128xf32>
    %c0_92 = arith.constant 0 : index
    %c0_93 = arith.constant 0 : index
    %85 = vector.load %arg11[%c0_92, %c0_93] : memref<2x128xf32, #tpu.memory_space<vmem>>, vector<2x128xf32>
    tpu.vector_store %arg11[%c0_92, %c0_93], %84 {strides = array<i32>} : memref<2x128xf32, #tpu.memory_space<vmem>>, vector<2x128xf32>,
    return
  }
  func.func @transform_0(%arg0: i32) -> (i32, i32) {
    %c0_i32 = arith.constant 0 : i32
    %c0_i32_0 = arith.constant 0 : i32
    %c0_i32_1 = arith.constant 0 : i32
    return %c0_i32, %c0_i32_0 : i32, i32
  }
  func.func @transform_1(%arg0: i32) -> (i32, i32) {
    %c0_i32 = arith.constant 0 : i32
    %c0_i32_0 = arith.constant 0 : i32
    %c0_i32_1 = arith.constant 0 : i32
    return %c0_i32, %c0_i32_0 : i32, i32
  }
  func.func @transform_2(%arg0: i32) -> (i32, i32) {
    %c0_i32 = arith.constant 0 : i32
    %c0_i32_0 = arith.constant 0 : i32
    %c0_i32_1 = arith.constant 0 : i32
    return %c0_i32, %c0_i32_0 : i32, i32
  }
  func.func @transform_3(%arg0: i32) -> (i32, i32) {
    %c0_i32 = arith.constant 0 : i32
    %c0_i32_0 = arith.constant 0 : i32
    %c0_i32_1 = arith.constant 0 : i32
    return %c0_i32, %c0_i32_0 : i32, i32
  }
  func.func @transform_4(%arg0: i32) -> (i32, i32) {
    %c0_i32 = arith.constant 0 : i32
    %c0_i32_0 = arith.constant 0 : i32
    %c0_i32_1 = arith.constant 0 : i32
    return %c0_i32, %c0_i32_0 : i32, i32
  }
  func.func @transform_5(%arg0: i32) -> (i32, i32) {
    %c0_i32 = arith.constant 0 : i32
    %c0_i32_0 = arith.constant 0 : i32
    %c0_i32_1 = arith.constant 0 : i32
    return %c0_i32, %c0_i32_0 : i32, i32
  }
  func.func @transform_6(%arg0: i32) -> (i32, i32) {
    %c0_i32 = arith.constant 0 : i32
    %c0_i32_0 = arith.constant 0 : i32
    %c0_i32_1 = arith.constant 0 : i32
    return %c0_i32, %c0_i32_0 : i32, i32
  }
  func.func @transform_7(%arg0: i32) -> (i32, i32) {
    %c0_i32 = arith.constant 0 : i32
    %c0_i32_0 = arith.constant 0 : i32
    %c0_i32_1 = arith.constant 0 : i32
    return %c0_i32, %c0_i32_0 : i32, i32
  }
  func.func @transform_8(%arg0: i32) -> (i32, i32) {
    %c0_i32 = arith.constant 0 : i32
    %c0_i32_0 = arith.constant 0 : i32
    %c0_i32_1 = arith.constant 0 : i32
    return %c0_i32, %c0_i32_0 : i32, i32
  }
  func.func @transform_9(%arg0: i32) -> (i32, i32) {
    %c0_i32 = arith.constant 0 : i32
    %c0_i32_0 = arith.constant 0 : i32
    %c0_i32_1 = arith.constant 0 : i32
    return %c0_i32, %c0_i32_0 : i32, i32
  }
  func.func @transform_10(%arg0: i32) -> (i32, i32) {
    %c0_i32 = arith.constant 0 : i32
    %c0_i32_0 = arith.constant 0 : i32
    %c0_i32_1 = arith.constant 0 : i32
    return %c0_i32, %c0_i32_0 : i32, i32
  }
}

</mosaic_0001>

<llo_original>
// kernel: cnn_forward.1
$region0: #{cnn_forward.1}
  #allocation0 [shape = 'u32[]', space=smem, size = 0x4, offset = 0x4, fixed_abs, tag = 'smem constant byte address 0x4 - core index']
  #allocation1 [shape = 'u32[72,128]{1,0:T(1,128)}', space=vmem, size = 0x9000, scoped, tag = 'internal scratch']
  #allocation2 [shape = 'f32[72,648]{1,0:T(8,128)}', space=vmem, size = 0x36000, scoped, tag = 'scratch operand']
  #allocation3 [shape = 'f32[8,648]{1,0:T(8,128)}', space=vmem, size = 0x6000, scoped, tag = 'scratch operand']
  #allocation4 [shape = 'f32[2,2592]{1,0:T(2,128)}', space=vmem, size = 0x5400, scoped, tag = 'scratch operand']
  %s0 = inlined_call_operand.vmem [shape: f32[36,648], index: 0, kind: input, shape index: {}]
  %s1 = inlined_call_operand.vmem [shape: f32[1,648], index: 1, kind: input, shape index: {}]
  %s2 = inlined_call_operand.vmem [shape: f32[8,36], index: 2, kind: input, shape index: {}]
  %s3 = inlined_call_operand.vmem [shape: f32[8,1], index: 3, kind: input, shape index: {}]
  %s4 = inlined_call_operand.vmem [shape: f32[8,72], index: 4, kind: input, shape index: {}]
  %s5 = inlined_call_operand.vmem [shape: f32[8,1], index: 5, kind: input, shape index: {}]
  %s6 = inlined_call_operand.vmem [shape: f32[2592,32], index: 6, kind: input, shape index: {}]
  %s7 = inlined_call_operand.vmem [shape: f32[1,32], index: 7, kind: input, shape index: {}]
  %s8 = inlined_call_operand.vmem [shape: f32[32,128], index: 8, kind: input, shape index: {}]
  %s9 = inlined_call_operand.vmem [shape: f32[1,128], index: 9, kind: input, shape index: {}]
  %s10 = inlined_call_operand.hbm [shape: f32[2,128], index: 10, kind: output, shape index: {}]
  %s11 = sld [smem:[#allocation0]]
  $region50: #{cnn_forward.1} parent=0
    _
  %s13 = ssub.s32 1, %s11
  %s14 = scalar_select 0, %s13, %s11
  $region1: #{cnn_forward.1} parent=0
    #allocation5 [shape = 'u8[1024]{0}', space=vmem, size = 0x400, scoped, tag = 'output window, operand 0, single buffered']
    #allocation6 [shape = 's32[1]{0}', space=sflag, size = 0x4, scoped, tag = 'scoped memory for cnn_forward.1']
    %15 = vsyncpa [#allocation6], 0
    // Predicated region
    $region2: #{cnn_forward.1} parent=1 // pred_check
      _
    $region3: #{cnn_forward.1} parent=1 // pred_check_branch
      %17 = sbr.rel (0) target = $region5
    $region4: #{cnn_forward.1} parent=1 // pred_region
      _
    $region5: #{cnn_forward.1} parent=1 // pred_fallthru
      _
    // Predicated region
    $region6: #{cnn_forward.1} parent=1 // pred_check
      _
    $region7: #{cnn_forward.1} parent=1 // pred_check_branch
      %19 = sbr.rel (0) target = $region9
    $region8: #{cnn_forward.1} parent=1 // pred_region
      _
    $region9: #{cnn_forward.1} parent=1 // pred_fallthru
      _
    // Predicated region
    $region10: #{cnn_forward.1} parent=1 // pred_check
      _
    $region11: #{cnn_forward.1} parent=1 // pred_check_branch
      %21 = sbr.rel (0) target = $region13
    $region12: #{cnn_forward.1} parent=1 // pred_region
      _
    $region13: #{cnn_forward.1} parent=1 // pred_fallthru
      _
    // Predicated region
    $region14: #{cnn_forward.1} parent=1 // pred_check
      _
    $region15: #{cnn_forward.1} parent=1 // pred_check_branch
      %23 = sbr.rel (0) target = $region17
    $region16: #{cnn_forward.1} parent=1 // pred_region
      _
    $region17: #{cnn_forward.1} parent=1 // pred_fallthru
      _
    // Predicated region
    $region18: #{cnn_forward.1} parent=1 // pred_check
      _
    $region19: #{cnn_forward.1} parent=1 // pred_check_branch
      %25 = sbr.rel (0) target = $region21
    $region20: #{cnn_forward.1} parent=1 // pred_region
      _
    $region21: #{cnn_forward.1} parent=1 // pred_fallthru
      _
    // Predicated region
    $region22: #{cnn_forward.1} parent=1 // pred_check
      _
    $region23: #{cnn_forward.1} parent=1 // pred_check_branch
      %27 = sbr.rel (0) target = $region25
    $region24: #{cnn_forward.1} parent=1 // pred_region
      _
    $region25: #{cnn_forward.1} parent=1 // pred_fallthru
      _
    // Predicated region
    $region26: #{cnn_forward.1} parent=1 // pred_check
      _
    $region27: #{cnn_forward.1} parent=1 // pred_check_branch
      %29 = sbr.rel (0) target = $region29
    $region28: #{cnn_forward.1} parent=1 // pred_region
      _
    $region29: #{cnn_forward.1} parent=1 // pred_fallthru
      _
    // Predicated region
    $region30: #{cnn_forward.1} parent=1 // pred_check
      _
    $region31: #{cnn_forward.1} parent=1 // pred_check_branch
      %31 = sbr.rel (0) target = $region33
    $region32: #{cnn_forward.1} parent=1 // pred_region
      _
    $region33: #{cnn_forward.1} parent=1 // pred_fallthru
      _
    // Predicated region
    $region34: #{cnn_forward.1} parent=1 // pred_check
      _
    $region35: #{cnn_forward.1} parent=1 // pred_check_branch
      %33 = sbr.rel (0) target = $region37
    $region36: #{cnn_forward.1} parent=1 // pred_region
      _
    $region37: #{cnn_forward.1} parent=1 // pred_fallthru
      _
    // Predicated region
    $region38: #{cnn_forward.1} parent=1 // pred_check
      _
    $region39: #{cnn_forward.1} parent=1 // pred_check_branch
      %35 = sbr.rel (0) target = $region41
    $region40: #{cnn_forward.1} parent=1 // pred_region
      _
    $region41: #{cnn_forward.1} parent=1 // pred_fallthru
      _
    %v36 = vld [vmem:[%s2] sm:$0xff]
    %v37 = vld [vmem:[%s0] sm:$0xff]
    %v38 = vld [vmem:[%s0 + $0x8] sm:$0xff]
    %v39 = vld [vmem:[%s0 + $0x10] sm:$0xff]
    %v40 = vld [vmem:[%s0 + $0x18] sm:$0xff]
    %v41 = vld [vmem:[%s0 + $0x20] sm:$0xff]
    %v42 = vld [vmem:[%s0 + $0x28] sm:$0xff]
    %v43 = vld [vmem:[%s0 + $0x30] sm:$0xff]
    %v44 = vld [vmem:[%s0 + $0x38] sm:$0xff]
    %v45 = vld [vmem:[%s0 + $0x40] sm:$0xff]
    %v46 = vld [vmem:[%s0 + $0x48] sm:$0xff]
    %v47 = vld [vmem:[%s0 + $0x50] sm:$0xff]
    %v48 = vld [vmem:[%s0 + $0x58] sm:$0xff]
    %v49 = vld [vmem:[%s0 + $0x60] sm:$0xff]
    %v50 = vld [vmem:[%s0 + $0x68] sm:$0xff]
    %v51 = vld [vmem:[%s0 + $0x70] sm:$0xff]
    %v52 = vld [vmem:[%s0 + $0x78] sm:$0xff]
    %v53 = vld [vmem:[%s0 + $0x80] sm:$0xff]
    %v54 = vld [vmem:[%s0 + $0x88] sm:$0xff]
    %v55 = vld [vmem:[%s0 + $0x90] sm:$0xff]
    %v56 = vld [vmem:[%s0 + $0x98] sm:$0xff]
    %v57 = vld [vmem:[%s0 + $0xa0] sm:$0xff]
    %v58 = vld [vmem:[%s0 + $0xa8] sm:$0xff]
    %v59 = vld [vmem:[%s0 + $0xb0] sm:$0xff]
    %v60 = vld [vmem:[%s0 + $0xb8] sm:$0xff]
    %v61 = vld [vmem:[%s0 + $0xc0] sm:$0xf]
    %v62 = vld [vmem:[%s0 + $0xc8] sm:$0xf]
    %v63 = vld [vmem:[%s0 + $0xd0] sm:$0xf]
    %v64 = vld [vmem:[%s0 + $0xd8] sm:$0xf]
    %v65 = vld [vmem:[%s0 + $0xe0] sm:$0xf]
    %v66 = vld [vmem:[%s0 + $0xe8] sm:$0xf]
    %v67 = vld [vmem:[%s3] sm:$0xff]
    %69 = vset.pattern.permute.xlu0 0
    %70 = vperm.xlu0 %69, %v67
    %v71 = vpop.permute.xlu0 %70
    %vm73 = vcmask 293888
    %v75 = vsel %vm73, %v36, 0
    %vm77 = vcmask 1043456
    %v79 = vsel %vm77, %v61, 0
    %v82 = vsel %vm77, %v62, 0
    %v85 = vsel %vm77, %v63, 0
    %v88 = vsel %vm77, %v64, 0
    %v91 = vsel %vm77, %v65, 0
    %v94 = vsel %vm77, %v66, 0
    %96 = vmatpush.msra.mxu0 0.0
    %97 = vmatpush.msra.mxu0 0.0
    %98 = vmatpush.msra.mxu0 0.0
    %99 = vmatpush.msra.mxu0 0.0
    %100 = vmatpush.msra.mxu0 0.0
    %101 = vmatpush.msra.mxu0 0.0
    %102 = vmatpush.msra.mxu0 0.0
    %103 = vmatpush.msra.mxu0 0.0
    %104 = vmatpush.msra.mxu0 0.0
    %105 = vmatpush.msra.mxu0 0.0
    %106 = vmatpush.msra.mxu0 0.0
    %107 = vmatpush.msra.mxu0 %v79
    %108 = vmatpush.msra.mxu0 %v55
    %109 = vmatpush.msra.mxu0 %v49
    %110 = vmatpush.msra.mxu0 %v43
    %111 = vmatpush.msra.mxu0 %v37
    %112 = vmatmul.f32.gmra.mxu0 %v75
    %v113 = vpop.f32.mrf.mxu0
    %v114 = vadd.f32 %v71, %v113
    %115 = vdwg.mxu0
    %116 = vmatpush.msra.mxu0 0.0
    %117 = vmatpush.msra.mxu0 0.0
    %118 = vmatpush.msra.mxu0 0.0
    %119 = vmatpush.msra.mxu0 0.0
    %120 = vmatpush.msra.mxu0 0.0
    %121 = vmatpush.msra.mxu0 0.0
    %122 = vmatpush.msra.mxu0 0.0
    %123 = vmatpush.msra.mxu0 0.0
    %124 = vmatpush.msra.mxu0 0.0
    %125 = vmatpush.msra.mxu0 0.0
    %126 = vmatpush.msra.mxu0 0.0
    %127 = vmatpush.msra.mxu0 %v82
    %128 = vmatpush.msra.mxu0 %v56
    %129 = vmatpush.msra.mxu0 %v50
    %130 = vmatpush.msra.mxu0 %v44
    %131 = vmatpush.msra.mxu0 %v38
    %132 = vmatmul.f32.gmra.mxu0 %v75
    %v133 = vpop.f32.mrf.mxu0
    %v134 = vadd.f32 %v71, %v133
    %135 = vdwg.mxu0
    %136 = vmatpush.msra.mxu0 0.0
    %137 = vmatpush.msra.mxu0 0.0
    %138 = vmatpush.msra.mxu0 0.0
    %139 = vmatpush.msra.mxu0 0.0
    %140 = vmatpush.msra.mxu0 0.0
    %141 = vmatpush.msra.mxu0 0.0
    %142 = vmatpush.msra.mxu0 0.0
    %143 = vmatpush.msra.mxu0 0.0
    %144 = vmatpush.msra.mxu0 0.0
    %145 = vmatpush.msra.mxu0 0.0
    %146 = vmatpush.msra.mxu0 0.0
    %147 = vmatpush.msra.mxu0 %v85
    %148 = vmatpush.msra.mxu0 %v57
    %149 = vmatpush.msra.mxu0 %v51
    %150 = vmatpush.msra.mxu0 %v45
    %151 = vmatpush.msra.mxu0 %v39
    %152 = vmatmul.f32.gmra.mxu0 %v75
    %v153 = vpop.f32.mrf.mxu0
    %v154 = vadd.f32 %v71, %v153
    %155 = vdwg.mxu0
    %156 = vmatpush.msra.mxu0 0.0
    %157 = vmatpush.msra.mxu0 0.0
    %158 = vmatpush.msra.mxu0 0.0
    %159 = vmatpush.msra.mxu0 0.0
    %160 = vmatpush.msra.mxu0 0.0
    %161 = vmatpush.msra.mxu0 0.0
    %162 = vmatpush.msra.mxu0 0.0
    %163 = vmatpush.msra.mxu0 0.0
    %164 = vmatpush.msra.mxu0 0.0
    %165 = vmatpush.msra.mxu0 0.0
    %166 = vmatpush.msra.mxu0 0.0
    %167 = vmatpush.msra.mxu0 %v88
    %168 = vmatpush.msra.mxu0 %v58
    %169 = vmatpush.msra.mxu0 %v52
    %170 = vmatpush.msra.mxu0 %v46
    %171 = vmatpush.msra.mxu0 %v40
    %172 = vmatmul.f32.gmra.mxu0 %v75
    %v173 = vpop.f32.mrf.mxu0
    %v174 = vadd.f32 %v71, %v173
    %175 = vdwg.mxu0
    %176 = vmatpush.msra.mxu0 0.0
    %177 = vmatpush.msra.mxu0 0.0
    %178 = vmatpush.msra.mxu0 0.0
    %179 = vmatpush.msra.mxu0 0.0
    %180 = vmatpush.msra.mxu0 0.0
    %181 = vmatpush.msra.mxu0 0.0
    %182 = vmatpush.msra.mxu0 0.0
    %183 = vmatpush.msra.mxu0 0.0
    %184 = vmatpush.msra.mxu0 0.0
    %185 = vmatpush.msra.mxu0 0.0
    %186 = vmatpush.msra.mxu0 0.0
    %187 = vmatpush.msra.mxu0 %v91
    %188 = vmatpush.msra.mxu0 %v59
    %189 = vmatpush.msra.mxu0 %v53
    %190 = vmatpush.msra.mxu0 %v47
    %191 = vmatpush.msra.mxu0 %v41
    %192 = vmatmul.f32.gmra.mxu0 %v75
    %v193 = vpop.f32.mrf.mxu0
    %v194 = vadd.f32 %v71, %v193
    %195 = vdwg.mxu0
    %196 = vmatpush.msra.mxu0 0.0
    %197 = vmatpush.msra.mxu0 0.0
    %198 = vmatpush.msra.mxu0 0.0
    %199 = vmatpush.msra.mxu0 0.0
    %200 = vmatpush.msra.mxu0 0.0
    %201 = vmatpush.msra.mxu0 0.0
    %202 = vmatpush.msra.mxu0 0.0
    %203 = vmatpush.msra.mxu0 0.0
    %204 = vmatpush.msra.mxu0 0.0
    %205 = vmatpush.msra.mxu0 0.0
    %206 = vmatpush.msra.mxu0 0.0
    %207 = vmatpush.msra.mxu0 %v94
    %208 = vmatpush.msra.mxu0 %v60
    %209 = vmatpush.msra.mxu0 %v54
    %210 = vmatpush.msra.mxu0 %v48
    %211 = vmatpush.msra.mxu0 %v42
    %212 = vmatmul.f32.gmra.mxu0 %v75
    %v213 = vpop.f32.mrf.mxu0
    %v214 = vadd.f32 %v71, %v213
    %215 = vdwg.mxu0
    %v216 = vmax.f32 %v114, 0.0
    %v217 = vmax.f32 %v134, 0.0
    %v218 = vmax.f32 %v154, 0.0
    %v219 = vmax.f32 %v174, 0.0
    %v220 = vmax.f32 %v194, 0.0
    %v221 = vmax.f32 %v214, 0.0
    %v222 = vld [vmem:[%s1] sm:$0x3f]
    %v224 = vperm.slane %v222, 0
    %v225 = vperm.slane %v222, 1
    %v226 = vperm.slane %v222, 2
    %v227 = vperm.slane %v222, 3
    %v228 = vperm.slane %v222, 4
    %v229 = vperm.slane %v222, 5
    %v236 = vmul.f32 %v216, %v224
    %v237 = vmul.f32 %v217, %v225
    %v238 = vmul.f32 %v218, %v226
    %v239 = vmul.f32 %v219, %v227
    %v240 = vmul.f32 %v220, %v228
    %v241 = vmul.f32 %v221, %v229
    %248 = vrot.lane.b32.xlu0 %v236, 19
    %v249 = vpop.permute.xlu0 %248
    %250 = vrot.lane.b32.xlu0 %v237, 19
    %v251 = vpop.permute.xlu0 %250
    %252 = vrot.lane.b32.xlu0 %v238, 19
    %v253 = vpop.permute.xlu0 %252
    %254 = vrot.lane.b32.xlu0 %v239, 19
    %v255 = vpop.permute.xlu0 %254
    %256 = vrot.lane.b32.xlu0 %v240, 19
    %v257 = vpop.permute.xlu0 %256
    %258 = vrot.lane.b32.xlu0 %v241, 19
    %v259 = vpop.permute.xlu0 %258
    %vm260 = vcmask 154624
    %v261 = vsel %vm260, %v249, %v251
    %v262 = vsel %vm260, %v251, %v253
    %v263 = vsel %vm260, %v253, %v255
    %v264 = vsel %vm260, %v255, %v257
    %v265 = vsel %vm260, %v257, %v259
    %v272 = vsel %vm260, 0.0, %v249
    %vm273 = vcmask 220160
    %v274 = vsel %vm273, %v265, 0.0
    %275 = vst [vmem:[#allocation2] sm:$0xff] %v272
    %276 = vst [vmem:[#allocation2 + $0x8] sm:$0xff] %v261
    %277 = vst [vmem:[#allocation2 + $0x10] sm:$0xff] %v262
    %278 = vst [vmem:[#allocation2 + $0x18] sm:$0xff] %v263
    %279 = vst [vmem:[#allocation2 + $0x20] sm:$0xff] %v264
    %vm280 = vcmask 64512
    %281 = vst.msk [vmem:[#allocation2 + $0x28] sm:$0xff] %vm280, %v274
    %284 = vrot.lane.b32.xlu0 %v272, 127
    %v285 = vpop.permute.xlu0 %284
    %286 = vrot.lane.b32.xlu0 %v261, 127
    %v287 = vpop.permute.xlu0 %286
    %288 = vrot.lane.b32.xlu0 %v262, 127
    %v289 = vpop.permute.xlu0 %288
    %290 = vrot.lane.b32.xlu0 %v263, 127
    %v291 = vpop.permute.xlu0 %290
    %292 = vrot.lane.b32.xlu0 %v264, 127
    %v293 = vpop.permute.xlu0 %292
    %294 = vrot.lane.b32.xlu0 %v274, 127
    %v295 = vpop.permute.xlu0 %294
    %vm296 = vcmask 1039360
    %v297 = vsel %vm296, %v285, %v287
    %v298 = vsel %vm296, %v287, %v289
    %v299 = vsel %vm296, %v289, %v291
    %v300 = vsel %vm296, %v291, %v293
    %v301 = vsel %vm296, %v293, %v295
    %308 = vst [vmem:[#allocation2 + $0x30] sm:$0xff] %v297
    %309 = vst [vmem:[#allocation2 + $0x38] sm:$0xff] %v298
    %310 = vst [vmem:[#allocation2 + $0x40] sm:$0xff] %v299
    %311 = vst [vmem:[#allocation2 + $0x48] sm:$0xff] %v300
    %312 = vst [vmem:[#allocation2 + $0x50] sm:$0xff] %v301
    %313 = vst.msk [vmem:[#allocation2 + $0x58] sm:$0xff] %vm280, %v295
    %314 = vrot.lane.b32.xlu0 %v272, 126
    %v315 = vpop.permute.xlu0 %314
    %316 = vrot.lane.b32.xlu0 %v261, 126
    %v317 = vpop.permute.xlu0 %316
    %318 = vrot.lane.b32.xlu0 %v262, 126
    %v319 = vpop.permute.xlu0 %318
    %320 = vrot.lane.b32.xlu0 %v263, 126
    %v321 = vpop.permute.xlu0 %320
    %322 = vrot.lane.b32.xlu0 %v264, 126
    %v323 = vpop.permute.xlu0 %322
    %324 = vrot.lane.b32.xlu0 %v274, 126
    %v325 = vpop.permute.xlu0 %324
    %vm326 = vcmask 1031168
    %v327 = vsel %vm326, %v315, %v317
    %v328 = vsel %vm326, %v317, %v319
    %v329 = vsel %vm326, %v319, %v321
    %v330 = vsel %vm326, %v321, %v323
    %v331 = vsel %vm326, %v323, %v325
    %338 = vst [vmem:[#allocation2 + $0x60] sm:$0xff] %v327
    %339 = vst [vmem:[#allocation2 + $0x68] sm:$0xff] %v328
    %340 = vst [vmem:[#allocation2 + $0x70] sm:$0xff] %v329
    %341 = vst [vmem:[#allocation2 + $0x78] sm:$0xff] %v330
    %342 = vst [vmem:[#allocation2 + $0x80] sm:$0xff] %v331
    %343 = vst.msk [vmem:[#allocation2 + $0x88] sm:$0xff] %vm280, %v325
    %344 = vrot.lane.b32.xlu0 %v272, 110
    %v345 = vpop.permute.xlu0 %344
    %346 = vrot.lane.b32.xlu0 %v261, 110
    %v347 = vpop.permute.xlu0 %346
    %348 = vrot.lane.b32.xlu0 %v262, 110
    %v349 = vpop.permute.xlu0 %348
    %350 = vrot.lane.b32.xlu0 %v263, 110
    %v351 = vpop.permute.xlu0 %350
    %352 = vrot.lane.b32.xlu0 %v264, 110
    %v353 = vpop.permute.xlu0 %352
    %354 = vrot.lane.b32.xlu0 %v274, 110
    %v355 = vpop.permute.xlu0 %354
    %vm356 = vcmask 900096
    %v357 = vsel %vm356, %v345, %v347
    %v358 = vsel %vm356, %v347, %v349
    %v359 = vsel %vm356, %v349, %v351
    %v360 = vsel %vm356, %v351, %v353
    %v361 = vsel %vm356, %v353, %v355
    %368 = vst [vmem:[#allocation2 + $0x90] sm:$0xff] %v357
    %369 = vst [vmem:[#allocation2 + $0x98] sm:$0xff] %v358
    %370 = vst [vmem:[#allocation2 + $0xa0] sm:$0xff] %v359
    %371 = vst [vmem:[#allocation2 + $0xa8] sm:$0xff] %v360
    %372 = vst [vmem:[#allocation2 + $0xb0] sm:$0xff] %v361
    %373 = vst.msk [vmem:[#allocation2 + $0xb8] sm:$0xff] %vm280, %v355
    %374 = vrot.lane.b32.xlu0 %v272, 109
    %v375 = vpop.permute.xlu0 %374
    %376 = vrot.lane.b32.xlu0 %v261, 109
    %v377 = vpop.permute.xlu0 %376
    %378 = vrot.lane.b32.xlu0 %v262, 109
    %v379 = vpop.permute.xlu0 %378
    %380 = vrot.lane.b32.xlu0 %v263, 109
    %v381 = vpop.permute.xlu0 %380
    %382 = vrot.lane.b32.xlu0 %v264, 109
    %v383 = vpop.permute.xlu0 %382
    %384 = vrot.lane.b32.xlu0 %v274, 109
    %v385 = vpop.permute.xlu0 %384
    %vm386 = vcmask 891904
    %v387 = vsel %vm386, %v375, %v377
    %v388 = vsel %vm386, %v377, %v379
    %v389 = vsel %vm386, %v379, %v381
    %v390 = vsel %vm386, %v381, %v383
    %v391 = vsel %vm386, %v383, %v385
    %398 = vst [vmem:[#allocation2 + $0xc0] sm:$0xff] %v387
    %399 = vst [vmem:[#allocation2 + $0xc8] sm:$0xff] %v388
    %400 = vst [vmem:[#allocation2 + $0xd0] sm:$0xff] %v389
    %401 = vst [vmem:[#allocation2 + $0xd8] sm:$0xff] %v390
    %402 = vst [vmem:[#allocation2 + $0xe0] sm:$0xff] %v391
    %403 = vst.msk [vmem:[#allocation2 + $0xe8] sm:$0xff] %vm280, %v385
    %404 = vrot.lane.b32.xlu0 %v272, 108
    %v405 = vpop.permute.xlu0 %404
    %406 = vrot.lane.b32.xlu0 %v261, 108
    %v407 = vpop.permute.xlu0 %406
    %408 = vrot.lane.b32.xlu0 %v262, 108
    %v409 = vpop.permute.xlu0 %408
    %410 = vrot.lane.b32.xlu0 %v263, 108
    %v411 = vpop.permute.xlu0 %410
    %412 = vrot.lane.b32.xlu0 %v264, 108
    %v413 = vpop.permute.xlu0 %412
    %414 = vrot.lane.b32.xlu0 %v274, 108
    %v415 = vpop.permute.xlu0 %414
    %vm416 = vcmask 883712
    %v417 = vsel %vm416, %v405, %v407
    %v418 = vsel %vm416, %v407, %v409
    %v419 = vsel %vm416, %v409, %v411
    %v420 = vsel %vm416, %v411, %v413
    %v421 = vsel %vm416, %v413, %v415
    %428 = vst [vmem:[#allocation2 + $0xf0] sm:$0xff] %v417
    %429 = vst [vmem:[#allocation2 + $0xf8] sm:$0xff] %v418
    %430 = vst [vmem:[#allocation2 + $0x100] sm:$0xff] %v419
    %431 = vst [vmem:[#allocation2 + $0x108] sm:$0xff] %v420
    %432 = vst [vmem:[#allocation2 + $0x110] sm:$0xff] %v421
    %433 = vst.msk [vmem:[#allocation2 + $0x118] sm:$0xff] %vm280, %v415
    %434 = vrot.lane.b32.xlu0 %v272, 92
    %v435 = vpop.permute.xlu0 %434
    %436 = vrot.lane.b32.xlu0 %v261, 92
    %v437 = vpop.permute.xlu0 %436
    %438 = vrot.lane.b32.xlu0 %v262, 92
    %v439 = vpop.permute.xlu0 %438
    %440 = vrot.lane.b32.xlu0 %v263, 92
    %v441 = vpop.permute.xlu0 %440
    %442 = vrot.lane.b32.xlu0 %v264, 92
    %v443 = vpop.permute.xlu0 %442
    %444 = vrot.lane.b32.xlu0 %v274, 92
    %v445 = vpop.permute.xlu0 %444
    %vm446 = vcmask 752640
    %v447 = vsel %vm446, %v435, %v437
    %v448 = vsel %vm446, %v437, %v439
    %v449 = vsel %vm446, %v439, %v441
    %v450 = vsel %vm446, %v441, %v443
    %v451 = vsel %vm446, %v443, %v445
    %458 = vst [vmem:[#allocation2 + $0x120] sm:$0xff] %v447
    %459 = vst [vmem:[#allocation2 + $0x128] sm:$0xff] %v448
    %460 = vst [vmem:[#allocation2 + $0x130] sm:$0xff] %v449
    %461 = vst [vmem:[#allocation2 + $0x138] sm:$0xff] %v450
    %462 = vst [vmem:[#allocation2 + $0x140] sm:$0xff] %v451
    %463 = vst.msk [vmem:[#allocation2 + $0x148] sm:$0xff] %vm280, %v445
    %464 = vrot.lane.b32.xlu0 %v272, 91
    %v465 = vpop.permute.xlu0 %464
    %466 = vrot.lane.b32.xlu0 %v261, 91
    %v467 = vpop.permute.xlu0 %466
    %468 = vrot.lane.b32.xlu0 %v262, 91
    %v469 = vpop.permute.xlu0 %468
    %470 = vrot.lane.b32.xlu0 %v263, 91
    %v471 = vpop.permute.xlu0 %470
    %472 = vrot.lane.b32.xlu0 %v264, 91
    %v473 = vpop.permute.xlu0 %472
    %474 = vrot.lane.b32.xlu0 %v274, 91
    %v475 = vpop.permute.xlu0 %474
    %vm476 = vcmask 744448
    %v477 = vsel %vm476, %v465, %v467
    %v478 = vsel %vm476, %v467, %v469
    %v479 = vsel %vm476, %v469, %v471
    %v480 = vsel %vm476, %v471, %v473
    %v481 = vsel %vm476, %v473, %v475
    %488 = vst [vmem:[#allocation2 + $0x150] sm:$0xff] %v477
    %489 = vst [vmem:[#allocation2 + $0x158] sm:$0xff] %v478
    %490 = vst [vmem:[#allocation2 + $0x160] sm:$0xff] %v479
    %491 = vst [vmem:[#allocation2 + $0x168] sm:$0xff] %v480
    %492 = vst [vmem:[#allocation2 + $0x170] sm:$0xff] %v481
    %493 = vst.msk [vmem:[#allocation2 + $0x178] sm:$0xff] %vm280, %v475
    %494 = vrot.lane.b32.xlu0 %v272, 90
    %v495 = vpop.permute.xlu0 %494
    %496 = vrot.lane.b32.xlu0 %v261, 90
    %v497 = vpop.permute.xlu0 %496
    %498 = vrot.lane.b32.xlu0 %v262, 90
    %v499 = vpop.permute.xlu0 %498
    %500 = vrot.lane.b32.xlu0 %v263, 90
    %v501 = vpop.permute.xlu0 %500
    %502 = vrot.lane.b32.xlu0 %v264, 90
    %v503 = vpop.permute.xlu0 %502
    %504 = vrot.lane.b32.xlu0 %v274, 90
    %v505 = vpop.permute.xlu0 %504
    %vm506 = vcmask 736256
    %v507 = vsel %vm506, %v495, %v497
    %v508 = vsel %vm506, %v497, %v499
    %v509 = vsel %vm506, %v499, %v501
    %v510 = vsel %vm506, %v501, %v503
    %v511 = vsel %vm506, %v503, %v505
    %518 = vst [vmem:[#allocation2 + $0x180] sm:$0xff] %v507
    %519 = vst [vmem:[#allocation2 + $0x188] sm:$0xff] %v508
    %520 = vst [vmem:[#allocation2 + $0x190] sm:$0xff] %v509
    %521 = vst [vmem:[#allocation2 + $0x198] sm:$0xff] %v510
    %522 = vst [vmem:[#allocation2 + $0x1a0] sm:$0xff] %v511
    %523 = vst.msk [vmem:[#allocation2 + $0x1a8] sm:$0xff] %vm280, %v505
    %v524 = vld [vmem:[%s4] sm:$0xff]
    %v525 = vld [vmem:[#allocation2] sm:$0xff]
    %v526 = vld [vmem:[#allocation2 + $0x8] sm:$0xff]
    %v527 = vld [vmem:[#allocation2 + $0x10] sm:$0xff]
    %v528 = vld [vmem:[#allocation2 + $0x18] sm:$0xff]
    %v529 = vld [vmem:[#allocation2 + $0x20] sm:$0xff]
    %v530 = vld [vmem:[#allocation2 + $0x28] sm:$0xff]
    %v531 = vld [vmem:[#allocation2 + $0x30] sm:$0xff]
    %v532 = vld [vmem:[#allocation2 + $0x38] sm:$0xff]
    %v533 = vld [vmem:[#allocation2 + $0x40] sm:$0xff]
    %v534 = vld [vmem:[#allocation2 + $0x48] sm:$0xff]
    %v535 = vld [vmem:[#allocation2 + $0x50] sm:$0xff]
    %v536 = vld [vmem:[#allocation2 + $0x58] sm:$0xff]
    %v537 = vld [vmem:[#allocation2 + $0x60] sm:$0xff]
    %v538 = vld [vmem:[#allocation2 + $0x68] sm:$0xff]
    %v539 = vld [vmem:[#allocation2 + $0x70] sm:$0xff]
    %v540 = vld [vmem:[#allocation2 + $0x78] sm:$0xff]
    %v541 = vld [vmem:[#allocation2 + $0x80] sm:$0xff]
    %v542 = vld [vmem:[#allocation2 + $0x88] sm:$0xff]
    %v543 = vld [vmem:[#allocation2 + $0x90] sm:$0xff]
    %v544 = vld [vmem:[#allocation2 + $0x98] sm:$0xff]
    %v545 = vld [vmem:[#allocation2 + $0xa0] sm:$0xff]
    %v546 = vld [vmem:[#allocation2 + $0xa8] sm:$0xff]
    %v547 = vld [vmem:[#allocation2 + $0xb0] sm:$0xff]
    %v548 = vld [vmem:[#allocation2 + $0xb8] sm:$0xff]
    %v549 = vld [vmem:[#allocation2 + $0xc0] sm:$0xff]
    %v550 = vld [vmem:[#allocation2 + $0xc8] sm:$0xff]
    %v551 = vld [vmem:[#allocation2 + $0xd0] sm:$0xff]
    %v552 = vld [vmem:[#allocation2 + $0xd8] sm:$0xff]
    %v553 = vld [vmem:[#allocation2 + $0xe0] sm:$0xff]
    %v554 = vld [vmem:[#allocation2 + $0xe8] sm:$0xff]
    %v555 = vld [vmem:[#allocation2 + $0xf0] sm:$0xff]
    %v556 = vld [vmem:[#allocation2 + $0xf8] sm:$0xff]
    %v557 = vld [vmem:[#allocation2 + $0x100] sm:$0xff]
    %v558 = vld [vmem:[#allocation2 + $0x108] sm:$0xff]
    %v559 = vld [vmem:[#allocation2 + $0x110] sm:$0xff]
    %v560 = vld [vmem:[#allocation2 + $0x118] sm:$0xff]
    %v561 = vld [vmem:[#allocation2 + $0x120] sm:$0xff]
    %v562 = vld [vmem:[#allocation2 + $0x128] sm:$0xff]
    %v563 = vld [vmem:[#allocation2 + $0x130] sm:$0xff]
    %v564 = vld [vmem:[#allocation2 + $0x138] sm:$0xff]
    %v565 = vld [vmem:[#allocation2 + $0x140] sm:$0xff]
    %v566 = vld [vmem:[#allocation2 + $0x148] sm:$0xff]
    %v567 = vld [vmem:[#allocation2 + $0x150] sm:$0xff]
    %v568 = vld [vmem:[#allocation2 + $0x158] sm:$0xff]
    %v569 = vld [vmem:[#allocation2 + $0x160] sm:$0xff]
    %v570 = vld [vmem:[#allocation2 + $0x168] sm:$0xff]
    %v571 = vld [vmem:[#allocation2 + $0x170] sm:$0xff]
    %v572 = vld [vmem:[#allocation2 + $0x178] sm:$0xff]
    %v573 = vld [vmem:[#allocation2 + $0x180] sm:$0xff]
    %v574 = vld [vmem:[#allocation2 + $0x188] sm:$0xff]
    %v575 = vld [vmem:[#allocation2 + $0x190] sm:$0xff]
    %v576 = vld [vmem:[#allocation2 + $0x198] sm:$0xff]
    %v577 = vld [vmem:[#allocation2 + $0x1a0] sm:$0xff]
    %v578 = vld [vmem:[#allocation2 + $0x1a8] sm:$0xff]
    %v579 = vld [vmem:[%s5] sm:$0xff]
    %581 = vset.pattern.permute.xlu0 0
    %582 = vperm.xlu0 %581, %v579
    %v583 = vpop.permute.xlu0 %582
    %vm585 = vcmask 588800
    %v587 = vsel %vm585, %v524, 0
    %589 = vmatpush.msra.mxu0 0.0
    %590 = vmatpush.msra.mxu0 0.0
    %591 = vmatpush.msra.mxu0 0.0
    %592 = vmatpush.msra.mxu0 0.0
    %593 = vmatpush.msra.mxu0 0.0
    %594 = vmatpush.msra.mxu0 0.0
    %595 = vmatpush.msra.mxu0 0.0
    %596 = vmatpush.msra.mxu0 %v573
    %597 = vmatpush.msra.mxu0 %v567
    %598 = vmatpush.msra.mxu0 %v561
    %599 = vmatpush.msra.mxu0 %v555
    %600 = vmatpush.msra.mxu0 %v549
    %601 = vmatpush.msra.mxu0 %v543
    %602 = vmatpush.msra.mxu0 %v537
    %603 = vmatpush.msra.mxu0 %v531
    %604 = vmatpush.msra.mxu0 %v525
    %605 = vmatmul.f32.gmra.mxu0 %v587
    %v606 = vpop.f32.mrf.mxu0
    %v607 = vadd.f32 %v583, %v606
    %608 = vdwg.mxu0
    %609 = vmatpush.msra.mxu0 0.0
    %610 = vmatpush.msra.mxu0 0.0
    %611 = vmatpush.msra.mxu0 0.0
    %612 = vmatpush.msra.mxu0 0.0
    %613 = vmatpush.msra.mxu0 0.0
    %614 = vmatpush.msra.mxu0 0.0
    %615 = vmatpush.msra.mxu0 0.0
    %616 = vmatpush.msra.mxu0 %v574
    %617 = vmatpush.msra.mxu0 %v568
    %618 = vmatpush.msra.mxu0 %v562
    %619 = vmatpush.msra.mxu0 %v556
    %620 = vmatpush.msra.mxu0 %v550
    %621 = vmatpush.msra.mxu0 %v544
    %622 = vmatpush.msra.mxu0 %v538
    %623 = vmatpush.msra.mxu0 %v532
    %624 = vmatpush.msra.mxu0 %v526
    %625 = vmatmul.f32.gmra.mxu0 %v587
    %v626 = vpop.f32.mrf.mxu0
    %v627 = vadd.f32 %v583, %v626
    %628 = vdwg.mxu0
    %629 = vmatpush.msra.mxu0 0.0
    %630 = vmatpush.msra.mxu0 0.0
    %631 = vmatpush.msra.mxu0 0.0
    %632 = vmatpush.msra.mxu0 0.0
    %633 = vmatpush.msra.mxu0 0.0
    %634 = vmatpush.msra.mxu0 0.0
    %635 = vmatpush.msra.mxu0 0.0
    %636 = vmatpush.msra.mxu0 %v575
    %637 = vmatpush.msra.mxu0 %v569
    %638 = vmatpush.msra.mxu0 %v563
    %639 = vmatpush.msra.mxu0 %v557
    %640 = vmatpush.msra.mxu0 %v551
    %641 = vmatpush.msra.mxu0 %v545
    %642 = vmatpush.msra.mxu0 %v539
    %643 = vmatpush.msra.mxu0 %v533
    %644 = vmatpush.msra.mxu0 %v527
    %645 = vmatmul.f32.gmra.mxu0 %v587
    %v646 = vpop.f32.mrf.mxu0
    %v647 = vadd.f32 %v583, %v646
    %648 = vdwg.mxu0
    %649 = vmatpush.msra.mxu0 0.0
    %650 = vmatpush.msra.mxu0 0.0
    %651 = vmatpush.msra.mxu0 0.0
    %652 = vmatpush.msra.mxu0 0.0
    %653 = vmatpush.msra.mxu0 0.0
    %654 = vmatpush.msra.mxu0 0.0
    %655 = vmatpush.msra.mxu0 0.0
    %656 = vmatpush.msra.mxu0 %v576
    %657 = vmatpush.msra.mxu0 %v570
    %658 = vmatpush.msra.mxu0 %v564
    %659 = vmatpush.msra.mxu0 %v558
    %660 = vmatpush.msra.mxu0 %v552
    %661 = vmatpush.msra.mxu0 %v546
    %662 = vmatpush.msra.mxu0 %v540
    %663 = vmatpush.msra.mxu0 %v534
    %664 = vmatpush.msra.mxu0 %v528
    %665 = vmatmul.f32.gmra.mxu0 %v587
    %v666 = vpop.f32.mrf.mxu0
    %v667 = vadd.f32 %v583, %v666
    %668 = vdwg.mxu0
    %669 = vmatpush.msra.mxu0 0.0
    %670 = vmatpush.msra.mxu0 0.0
    %671 = vmatpush.msra.mxu0 0.0
    %672 = vmatpush.msra.mxu0 0.0
    %673 = vmatpush.msra.mxu0 0.0
    %674 = vmatpush.msra.mxu0 0.0
    %675 = vmatpush.msra.mxu0 0.0
    %676 = vmatpush.msra.mxu0 %v577
    %677 = vmatpush.msra.mxu0 %v571
    %678 = vmatpush.msra.mxu0 %v565
    %679 = vmatpush.msra.mxu0 %v559
    %680 = vmatpush.msra.mxu0 %v553
    %681 = vmatpush.msra.mxu0 %v547
    %682 = vmatpush.msra.mxu0 %v541
    %683 = vmatpush.msra.mxu0 %v535
    %684 = vmatpush.msra.mxu0 %v529
    %685 = vmatmul.f32.gmra.mxu0 %v587
    %v686 = vpop.f32.mrf.mxu0
    %v687 = vadd.f32 %v583, %v686
    %688 = vdwg.mxu0
    %689 = vmatpush.msra.mxu0 0.0
    %690 = vmatpush.msra.mxu0 0.0
    %691 = vmatpush.msra.mxu0 0.0
    %692 = vmatpush.msra.mxu0 0.0
    %693 = vmatpush.msra.mxu0 0.0
    %694 = vmatpush.msra.mxu0 0.0
    %695 = vmatpush.msra.mxu0 0.0
    %696 = vmatpush.msra.mxu0 %v578
    %697 = vmatpush.msra.mxu0 %v572
    %698 = vmatpush.msra.mxu0 %v566
    %699 = vmatpush.msra.mxu0 %v560
    %700 = vmatpush.msra.mxu0 %v554
    %701 = vmatpush.msra.mxu0 %v548
    %702 = vmatpush.msra.mxu0 %v542
    %703 = vmatpush.msra.mxu0 %v536
    %704 = vmatpush.msra.mxu0 %v530
    %705 = vmatmul.f32.gmra.mxu0 %v587
    %v706 = vpop.f32.mrf.mxu0
    %v707 = vadd.f32 %v583, %v706
    %708 = vdwg.mxu0
    %v709 = vmax.f32 %v607, 0.0
    %v710 = vmax.f32 %v627, 0.0
    %v711 = vmax.f32 %v647, 0.0
    %v712 = vmax.f32 %v667, 0.0
    %v713 = vmax.f32 %v687, 0.0
    %v714 = vmax.f32 %v707, 0.0
    %715 = vst [vmem:[#allocation3] sm:$0xff] %v709
    %716 = vst [vmem:[#allocation3 + $0x8] sm:$0xff] %v710
    %717 = vst [vmem:[#allocation3 + $0x10] sm:$0xff] %v711
    %718 = vst [vmem:[#allocation3 + $0x18] sm:$0xff] %v712
    %719 = vst [vmem:[#allocation3 + $0x20] sm:$0xff] %v713
    %720 = vst.msk [vmem:[#allocation3 + $0x28] sm:$0xff] %vm280, %v714
    %v721 = vld [vmem:[#allocation3] ss:$8 sm:$0x7]
    %v722 = vlaneseq
    %vm723 = vcmp.ge.s32.totalorder %v722, 0
    %vm724 = vcmp.lt.s32.totalorder %v722, 324
    %vm725 = vmand %vm723, %vm724
    %726 = vst.msk [vmem:[#allocation4] ss:$2 sm:$0x7] %vm725, %v721
    %s727 = scalar_lea.vmem [#allocation3], 1
    %v728 = vld [vmem:[%s727] ss:$8 sm:$0x7]
    %730 = vrot.lane.b32.xlu0 %v728, 68
    %v731 = vpop.permute.xlu0 %730
    %v732 = vrot.slane %v731, 7
    %vm733 = vcmask 556032
    %v734 = vsel %vm733, %v732, %v731
    %vm736 = vcmp.ge.s32.totalorder %v722, 68
    %vm737 = vcmp.lt.s32.totalorder %v722, 392
    %vm738 = vmand %vm736, %vm737
    %s739 = scalar_lea.vmem [#allocation4], 4
    %740 = vst.msk [vmem:[%s739] ss:$2 sm:$0xf] %vm738, %v734
    %s741 = scalar_lea.vmem [#allocation3], 2
    %v742 = vld [vmem:[%s741] ss:$8 sm:$0x7]
    %744 = vrot.lane.b32.xlu0 %v742, 8
    %v745 = vpop.permute.xlu0 %744
    %v746 = vrot.slane %v745, 7
    %v747 = vsel %vm280, %v746, %v745
    %vm749 = vcmp.ge.s32.totalorder %v722, 8
    %vm750 = vcmp.lt.s32.totalorder %v722, 332
    %vm751 = vmand %vm749, %vm750
    %s752 = scalar_lea.vmem [#allocation4], 10
    %753 = vst.msk [vmem:[%s752] ss:$2 sm:$0x7] %vm751, %v747
    %s754 = scalar_lea.vmem [#allocation3], 3
    %v755 = vld [vmem:[%s754] ss:$8 sm:$0x7]
    %757 = vrot.lane.b32.xlu0 %v755, 76
    %v758 = vpop.permute.xlu0 %757
    %v759 = vrot.slane %v758, 7
    %vm760 = vcmask 621568
    %v761 = vsel %vm760, %v759, %v758
    %vm763 = vcmp.ge.s32.totalorder %v722, 76
    %vm764 = vcmp.lt.s32.totalorder %v722, 400
    %vm765 = vmand %vm763, %vm764
    %s766 = scalar_lea.vmem [#allocation4], 14
    %767 = vst.msk [vmem:[%s766] ss:$2 sm:$0xf] %vm765, %v761
    %s768 = scalar_lea.vmem [#allocation3], 4
    %v769 = vld [vmem:[%s768] ss:$8 sm:$0x7]
    %771 = vrot.lane.b32.xlu0 %v769, 16
    %v772 = vpop.permute.xlu0 %771
    %v773 = vrot.slane %v772, 7
    %vm774 = vcmask 130048
    %v775 = vsel %vm774, %v773, %v772
    %vm777 = vcmp.ge.s32.totalorder %v722, 16
    %vm778 = vcmp.lt.s32.totalorder %v722, 340
    %vm779 = vmand %vm777, %vm778
    %s780 = scalar_lea.vmem [#allocation4], 20
    %781 = vst.msk [vmem:[%s780] ss:$2 sm:$0x7] %vm779, %v775
    %s782 = scalar_lea.vmem [#allocation3], 5
    %v783 = vld [vmem:[%s782] ss:$8 sm:$0x7]
    %785 = vrot.lane.b32.xlu0 %v783, 84
    %v786 = vpop.permute.xlu0 %785
    %v787 = vrot.slane %v786, 7
    %vm788 = vcmask 687104
    %v789 = vsel %vm788, %v787, %v786
    %vm791 = vcmp.ge.s32.totalorder %v722, 84
    %vm792 = vcmp.lt.s32.totalorder %v722, 408
    %vm793 = vmand %vm791, %vm792
    %s794 = scalar_lea.vmem [#allocation4], 24
    %795 = vst.msk [vmem:[%s794] ss:$2 sm:$0xf] %vm793, %v789
    %s796 = scalar_lea.vmem [#allocation3], 6
    %v797 = vld [vmem:[%s796] ss:$8 sm:$0x7]
    %799 = vrot.lane.b32.xlu0 %v797, 24
    %v800 = vpop.permute.xlu0 %799
    %v801 = vrot.slane %v800, 7
    %vm802 = vcmask 195584
    %v803 = vsel %vm802, %v801, %v800
    %vm805 = vcmp.ge.s32.totalorder %v722, 24
    %vm806 = vcmp.lt.s32.totalorder %v722, 348
    %vm807 = vmand %vm805, %vm806
    %s808 = scalar_lea.vmem [#allocation4], 30
    %809 = vst.msk [vmem:[%s808] ss:$2 sm:$0x7] %vm807, %v803
    %s810 = scalar_lea.vmem [#allocation3], 7
    %v811 = vld [vmem:[%s810] ss:$8 sm:$0x7]
    %813 = vrot.lane.b32.xlu0 %v811, 92
    %v814 = vpop.permute.xlu0 %813
    %v815 = vrot.slane %v814, 7
    %v816 = vsel %vm446, %v815, %v814
    %vm818 = vcmp.ge.s32.totalorder %v722, 92
    %vm819 = vcmp.lt.s32.totalorder %v722, 416
    %vm820 = vmand %vm818, %vm819
    %s821 = scalar_lea.vmem [#allocation4], 34
    %822 = vst.msk [vmem:[%s821] ss:$2 sm:$0xf] %vm820, %v816
    %s823 = scalar_lea.vmem [#allocation3], 16
    %v824 = vld [vmem:[%s823] ss:$8 sm:$0xf]
    %826 = vrot.lane.b32.xlu0 %v824, 60
    %v827 = vpop.permute.xlu0 %826
    %v828 = vrot.slane %v827, 1
    %vm829 = vcmask 490496
    %v830 = vsel %vm829, %v827, %v828
    %s832 = scalar_lea.vmem [#allocation4], 1
    %833 = vst.msk [vmem:[%s832] ss:$2 sm:$0x7] %vm725, %v830
    %s834 = scalar_lea.vmem [#allocation3], 17
    %v835 = vld [vmem:[%s834] ss:$8 sm:$0xf]
    %s836 = scalar_lea.vmem [#allocation4], 5
    %837 = vst.msk [vmem:[%s836] ss:$2 sm:$0xf] %vm738, %v835
    %s838 = scalar_lea.vmem [#allocation3], 18
    %v839 = vld [vmem:[%s838] ss:$8 sm:$0xf]
    %841 = vrot.lane.b32.xlu0 %v839, 68
    %v842 = vpop.permute.xlu0 %841
    %v843 = vrot.slane %v842, 1
    %v844 = vsel %vm733, %v842, %v843
    %s846 = scalar_lea.vmem [#allocation4], 11
    %847 = vst.msk [vmem:[%s846] ss:$2 sm:$0x7] %vm751, %v844
    %s848 = scalar_lea.vmem [#allocation3], 19
    %v849 = vld [vmem:[%s848] ss:$8 sm:$0xf]
    %851 = vrot.lane.b32.xlu0 %v849, 8
    %v852 = vpop.permute.xlu0 %851
    %v853 = vrot.slane %v852, 7
    %v854 = vsel %vm280, %v853, %v852
    %s856 = scalar_lea.vmem [#allocation4], 15
    %857 = vst.msk [vmem:[%s856] ss:$2 sm:$0xf] %vm765, %v854
    %s858 = scalar_lea.vmem [#allocation3], 20
    %v859 = vld [vmem:[%s858] ss:$8 sm:$0xf]
    %861 = vrot.lane.b32.xlu0 %v859, 76
    %v862 = vpop.permute.xlu0 %861
    %v863 = vrot.slane %v862, 1
    %v864 = vsel %vm760, %v862, %v863
    %s866 = scalar_lea.vmem [#allocation4], 21
    %867 = vst.msk [vmem:[%s866] ss:$2 sm:$0x7] %vm779, %v864
    %s868 = scalar_lea.vmem [#allocation3], 21
    %v869 = vld [vmem:[%s868] ss:$8 sm:$0xf]
    %871 = vrot.lane.b32.xlu0 %v869, 16
    %v872 = vpop.permute.xlu0 %871
    %v873 = vrot.slane %v872, 7
    %v874 = vsel %vm774, %v873, %v872
    %s876 = scalar_lea.vmem [#allocation4], 25
    %877 = vst.msk [vmem:[%s876] ss:$2 sm:$0xf] %vm793, %v874
    %s878 = scalar_lea.vmem [#allocation3], 22
    %v879 = vld [vmem:[%s878] ss:$8 sm:$0xf]
    %881 = vrot.lane.b32.xlu0 %v879, 84
    %v882 = vpop.permute.xlu0 %881
    %v883 = vrot.slane %v882, 1
    %v884 = vsel %vm788, %v882, %v883
    %s886 = scalar_lea.vmem [#allocation4], 31
    %887 = vst.msk [vmem:[%s886] ss:$2 sm:$0x7] %vm807, %v884
    %s888 = scalar_lea.vmem [#allocation3], 23
    %v889 = vld [vmem:[%s888] ss:$8 sm:$0xf]
    %891 = vrot.lane.b32.xlu0 %v889, 24
    %v892 = vpop.permute.xlu0 %891
    %v893 = vrot.slane %v892, 7
    %v894 = vsel %vm802, %v893, %v892
    %s896 = scalar_lea.vmem [#allocation4], 35
    %897 = vst.msk [vmem:[%s896] ss:$2 sm:$0xf] %vm820, %v894
    %v898 = vld [vmem:[#allocation4] sm:$0xff]
    %v899 = vld [vmem:[#allocation4 + $0x8] sm:$0xff]
    %v900 = vld [vmem:[#allocation4 + $0x10] sm:$0xff]
    %v901 = vld [vmem:[#allocation4 + $0x18] sm:$0xff]
    %v902 = vld [vmem:[#allocation4 + $0x20] sm:$0xff]
    %v903 = vld [vmem:[#allocation4 + $0x28] sm:$0x3]
    %v904 = vld [vmem:[%s6] sm:$0xff]
    %v905 = vld [vmem:[%s6 + $0x8] sm:$0xff]
    %v906 = vld [vmem:[%s6 + $0x10] sm:$0xff]
    %v907 = vld [vmem:[%s6 + $0x18] sm:$0xff]
    %v908 = vld [vmem:[%s6 + $0x20] sm:$0xff]
    %v909 = vld [vmem:[%s6 + $0x28] sm:$0xff]
    %v910 = vld [vmem:[%s6 + $0x30] sm:$0xff]
    %v911 = vld [vmem:[%s6 + $0x38] sm:$0xff]
    %v912 = vld [vmem:[%s6 + $0x40] sm:$0xff]
    %v913 = vld [vmem:[%s6 + $0x48] sm:$0xff]
    %v914 = vld [vmem:[%s6 + $0x50] sm:$0xff]
    %v915 = vld [vmem:[%s6 + $0x58] sm:$0xff]
    %v916 = vld [vmem:[%s6 + $0x60] sm:$0xff]
    %v917 = vld [vmem:[%s6 + $0x68] sm:$0xff]
    %v918 = vld [vmem:[%s6 + $0x70] sm:$0xff]
    %v919 = vld [vmem:[%s6 + $0x78] sm:$0xff]
    %v920 = vld [vmem:[%s6 + $0x80] sm:$0xff]
    %v921 = vld [vmem:[%s6 + $0x88] sm:$0xff]
    %v922 = vld [vmem:[%s6 + $0x90] sm:$0xff]
    %v923 = vld [vmem:[%s6 + $0x98] sm:$0xff]
    %v924 = vld [vmem:[%s6 + $0xa0] sm:$0xff]
    %v925 = vld [vmem:[%s6 + $0xa8] sm:$0xff]
    %v926 = vld [vmem:[%s6 + $0xb0] sm:$0xff]
    %v927 = vld [vmem:[%s6 + $0xb8] sm:$0xff]
    %v928 = vld [vmem:[%s6 + $0xc0] sm:$0xff]
    %v929 = vld [vmem:[%s6 + $0xc8] sm:$0xff]
    %v930 = vld [vmem:[%s6 + $0xd0] sm:$0xff]
    %v931 = vld [vmem:[%s6 + $0xd8] sm:$0xff]
    %v932 = vld [vmem:[%s6 + $0xe0] sm:$0xff]
    %v933 = vld [vmem:[%s6 + $0xe8] sm:$0xff]
    %v934 = vld [vmem:[%s6 + $0xf0] sm:$0xff]
    %v935 = vld [vmem:[%s6 + $0xf8] sm:$0xff]
    %v936 = vld [vmem:[%s6 + $0x100] sm:$0xff]
    %v937 = vld [vmem:[%s6 + $0x108] sm:$0xff]
    %v938 = vld [vmem:[%s6 + $0x110] sm:$0xff]
    %v939 = vld [vmem:[%s6 + $0x118] sm:$0xff]
    %v940 = vld [vmem:[%s6 + $0x120] sm:$0xff]
    %v941 = vld [vmem:[%s6 + $0x128] sm:$0xff]
    %v942 = vld [vmem:[%s6 + $0x130] sm:$0xff]
    %v943 = vld [vmem:[%s6 + $0x138] sm:$0xff]
    %v944 = vld [vmem:[%s6 + $0x140] sm:$0xff]
    %v945 = vld [vmem:[%s6 + $0x148] sm:$0xff]
    %v946 = vld [vmem:[%s6 + $0x150] sm:$0xff]
    %v947 = vld [vmem:[%s6 + $0x158] sm:$0xff]
    %v948 = vld [vmem:[%s6 + $0x160] sm:$0xff]
    %v949 = vld [vmem:[%s6 + $0x168] sm:$0xff]
    %v950 = vld [vmem:[%s6 + $0x170] sm:$0xff]
    %v951 = vld [vmem:[%s6 + $0x178] sm:$0xff]
    %v952 = vld [vmem:[%s6 + $0x180] sm:$0xff]
    %v953 = vld [vmem:[%s6 + $0x188] sm:$0xff]
    %v954 = vld [vmem:[%s6 + $0x190] sm:$0xff]
    %v955 = vld [vmem:[%s6 + $0x198] sm:$0xff]
    %v956 = vld [vmem:[%s6 + $0x1a0] sm:$0xff]
    %v957 = vld [vmem:[%s6 + $0x1a8] sm:$0xff]
    %v958 = vld [vmem:[%s6 + $0x1b0] sm:$0xff]
    %v959 = vld [vmem:[%s6 + $0x1b8] sm:$0xff]
    %v960 = vld [vmem:[%s6 + $0x1c0] sm:$0xff]
    %v961 = vld [vmem:[%s6 + $0x1c8] sm:$0xff]
    %v962 = vld [vmem:[%s6 + $0x1d0] sm:$0xff]
    %v963 = vld [vmem:[%s6 + $0x1d8] sm:$0xff]
    %v964 = vld [vmem:[%s6 + $0x1e0] sm:$0xff]
    %v965 = vld [vmem:[%s6 + $0x1e8] sm:$0xff]
    %v966 = vld [vmem:[%s6 + $0x1f0] sm:$0xff]
    %v967 = vld [vmem:[%s6 + $0x1f8] sm:$0xff]
    %v968 = vld [vmem:[%s6 + $0x200] sm:$0xff]
    %v969 = vld [vmem:[%s6 + $0x208] sm:$0xff]
    %v970 = vld [vmem:[%s6 + $0x210] sm:$0xff]
    %v971 = vld [vmem:[%s6 + $0x218] sm:$0xff]
    %v972 = vld [vmem:[%s6 + $0x220] sm:$0xff]
    %v973 = vld [vmem:[%s6 + $0x228] sm:$0xff]
    %v974 = vld [vmem:[%s6 + $0x230] sm:$0xff]
    %v975 = vld [vmem:[%s6 + $0x238] sm:$0xff]
    %v976 = vld [vmem:[%s6 + $0x240] sm:$0xff]
    %v977 = vld [vmem:[%s6 + $0x248] sm:$0xff]
    %v978 = vld [vmem:[%s6 + $0x250] sm:$0xff]
    %v979 = vld [vmem:[%s6 + $0x258] sm:$0xff]
    %v980 = vld [vmem:[%s6 + $0x260] sm:$0xff]
    %v981 = vld [vmem:[%s6 + $0x268] sm:$0xff]
    %v982 = vld [vmem:[%s6 + $0x270] sm:$0xff]
    %v983 = vld [vmem:[%s6 + $0x278] sm:$0xff]
    %v984 = vld [vmem:[%s6 + $0x280] sm:$0xff]
    %v985 = vld [vmem:[%s6 + $0x288] sm:$0xff]
    %v986 = vld [vmem:[%s6 + $0x290] sm:$0xff]
    %v987 = vld [vmem:[%s6 + $0x298] sm:$0xff]
    %v988 = vld [vmem:[%s6 + $0x2a0] sm:$0xff]
    %v989 = vld [vmem:[%s6 + $0x2a8] sm:$0xff]
    %v990 = vld [vmem:[%s6 + $0x2b0] sm:$0xff]
    %v991 = vld [vmem:[%s6 + $0x2b8] sm:$0xff]
    %v992 = vld [vmem:[%s6 + $0x2c0] sm:$0xff]
    %v993 = vld [vmem:[%s6 + $0x2c8] sm:$0xff]
    %v994 = vld [vmem:[%s6 + $0x2d0] sm:$0xff]
    %v995 = vld [vmem:[%s6 + $0x2d8] sm:$0xff]
    %v996 = vld [vmem:[%s6 + $0x2e0] sm:$0xff]
    %v997 = vld [vmem:[%s6 + $0x2e8] sm:$0xff]
    %v998 = vld [vmem:[%s6 + $0x2f0] sm:$0xff]
    %v999 = vld [vmem:[%s6 + $0x2f8] sm:$0xff]
    %v1000 = vld [vmem:[%s6 + $0x300] sm:$0xff]
    %v1001 = vld [vmem:[%s6 + $0x308] sm:$0xff]
    %v1002 = vld [vmem:[%s6 + $0x310] sm:$0xff]
    %v1003 = vld [vmem:[%s6 + $0x318] sm:$0xff]
    %v1004 = vld [vmem:[%s6 + $0x320] sm:$0xff]
    %v1005 = vld [vmem:[%s6 + $0x328] sm:$0xff]
    %v1006 = vld [vmem:[%s6 + $0x330] sm:$0xff]
    %v1007 = vld [vmem:[%s6 + $0x338] sm:$0xff]
    %v1008 = vld [vmem:[%s6 + $0x340] sm:$0xff]
    %v1009 = vld [vmem:[%s6 + $0x348] sm:$0xff]
    %v1010 = vld [vmem:[%s6 + $0x350] sm:$0xff]
    %v1011 = vld [vmem:[%s6 + $0x358] sm:$0xff]
    %v1012 = vld [vmem:[%s6 + $0x360] sm:$0xff]
    %v1013 = vld [vmem:[%s6 + $0x368] sm:$0xff]
    %v1014 = vld [vmem:[%s6 + $0x370] sm:$0xff]
    %v1015 = vld [vmem:[%s6 + $0x378] sm:$0xff]
    %v1016 = vld [vmem:[%s6 + $0x380] sm:$0xff]
    %v1017 = vld [vmem:[%s6 + $0x388] sm:$0xff]
    %v1018 = vld [vmem:[%s6 + $0x390] sm:$0xff]
    %v1019 = vld [vmem:[%s6 + $0x398] sm:$0xff]
    %v1020 = vld [vmem:[%s6 + $0x3a0] sm:$0xff]
    %v1021 = vld [vmem:[%s6 + $0x3a8] sm:$0xff]
    %v1022 = vld [vmem:[%s6 + $0x3b0] sm:$0xff]
    %v1023 = vld [vmem:[%s6 + $0x3b8] sm:$0xff]
    %v1024 = vld [vmem:[%s6 + $0x3c0] sm:$0xff]
    %v1025 = vld [vmem:[%s6 + $0x3c8] sm:$0xff]
    %v1026 = vld [vmem:[%s6 + $0x3d0] sm:$0xff]
    %v1027 = vld [vmem:[%s6 + $0x3d8] sm:$0xff]
    %v1028 = vld [vmem:[%s6 + $0x3e0] sm:$0xff]
    %v1029 = vld [vmem:[%s6 + $0x3e8] sm:$0xff]
    %v1030 = vld [vmem:[%s6 + $0x3f0] sm:$0xff]
    %v1031 = vld [vmem:[%s6 + $0x3f8] sm:$0xff]
    %v1032 = vld [vmem:[%s6 + $0x400] sm:$0xff]
    %v1033 = vld [vmem:[%s6 + $0x408] sm:$0xff]
    %v1034 = vld [vmem:[%s6 + $0x410] sm:$0xff]
    %v1035 = vld [vmem:[%s6 + $0x418] sm:$0xff]
    %v1036 = vld [vmem:[%s6 + $0x420] sm:$0xff]
    %v1037 = vld [vmem:[%s6 + $0x428] sm:$0xff]
    %v1038 = vld [vmem:[%s6 + $0x430] sm:$0xff]
    %v1039 = vld [vmem:[%s6 + $0x438] sm:$0xff]
    %v1040 = vld [vmem:[%s6 + $0x440] sm:$0xff]
    %v1041 = vld [vmem:[%s6 + $0x448] sm:$0xff]
    %v1042 = vld [vmem:[%s6 + $0x450] sm:$0xff]
    %v1043 = vld [vmem:[%s6 + $0x458] sm:$0xff]
    %v1044 = vld [vmem:[%s6 + $0x460] sm:$0xff]
    %v1045 = vld [vmem:[%s6 + $0x468] sm:$0xff]
    %v1046 = vld [vmem:[%s6 + $0x470] sm:$0xff]
    %v1047 = vld [vmem:[%s6 + $0x478] sm:$0xff]
    %v1048 = vld [vmem:[%s6 + $0x480] sm:$0xff]
    %v1049 = vld [vmem:[%s6 + $0x488] sm:$0xff]
    %v1050 = vld [vmem:[%s6 + $0x490] sm:$0xff]
    %v1051 = vld [vmem:[%s6 + $0x498] sm:$0xff]
    %v1052 = vld [vmem:[%s6 + $0x4a0] sm:$0xff]
    %v1053 = vld [vmem:[%s6 + $0x4a8] sm:$0xff]
    %v1054 = vld [vmem:[%s6 + $0x4b0] sm:$0xff]
    %v1055 = vld [vmem:[%s6 + $0x4b8] sm:$0xff]
    %v1056 = vld [vmem:[%s6 + $0x4c0] sm:$0xff]
    %v1057 = vld [vmem:[%s6 + $0x4c8] sm:$0xff]
    %v1058 = vld [vmem:[%s6 + $0x4d0] sm:$0xff]
    %v1059 = vld [vmem:[%s6 + $0x4d8] sm:$0xff]
    %v1060 = vld [vmem:[%s6 + $0x4e0] sm:$0xff]
    %v1061 = vld [vmem:[%s6 + $0x4e8] sm:$0xff]
    %v1062 = vld [vmem:[%s6 + $0x4f0] sm:$0xff]
    %v1063 = vld [vmem:[%s6 + $0x4f8] sm:$0xff]
    %v1064 = vld [vmem:[%s6 + $0x500] sm:$0xff]
    %v1065 = vld [vmem:[%s6 + $0x508] sm:$0xff]
    %v1066 = vld [vmem:[%s6 + $0x510] sm:$0xff]
    %v1067 = vld [vmem:[%s6 + $0x518] sm:$0xff]
    %v1068 = vld [vmem:[%s6 + $0x520] sm:$0xff]
    %v1069 = vld [vmem:[%s6 + $0x528] sm:$0xff]
    %v1070 = vld [vmem:[%s6 + $0x530] sm:$0xff]
    %v1071 = vld [vmem:[%s6 + $0x538] sm:$0xff]
    %v1072 = vld [vmem:[%s6 + $0x540] sm:$0xff]
    %v1073 = vld [vmem:[%s6 + $0x548] sm:$0xff]
    %v1074 = vld [vmem:[%s6 + $0x550] sm:$0xff]
    %v1075 = vld [vmem:[%s6 + $0x558] sm:$0xff]
    %v1076 = vld [vmem:[%s6 + $0x560] sm:$0xff]
    %v1077 = vld [vmem:[%s6 + $0x568] sm:$0xff]
    %v1078 = vld [vmem:[%s6 + $0x570] sm:$0xff]
    %v1079 = vld [vmem:[%s6 + $0x578] sm:$0xff]
    %v1080 = vld [vmem:[%s6 + $0x580] sm:$0xff]
    %v1081 = vld [vmem:[%s6 + $0x588] sm:$0xff]
    %v1082 = vld [vmem:[%s6 + $0x590] sm:$0xff]
    %v1083 = vld [vmem:[%s6 + $0x598] sm:$0xff]
    %v1084 = vld [vmem:[%s6 + $0x5a0] sm:$0xff]
    %v1085 = vld [vmem:[%s6 + $0x5a8] sm:$0xff]
    %v1086 = vld [vmem:[%s6 + $0x5b0] sm:$0xff]
    %v1087 = vld [vmem:[%s6 + $0x5b8] sm:$0xff]
    %v1088 = vld [vmem:[%s6 + $0x5c0] sm:$0xff]
    %v1089 = vld [vmem:[%s6 + $0x5c8] sm:$0xff]
    %v1090 = vld [vmem:[%s6 + $0x5d0] sm:$0xff]
    %v1091 = vld [vmem:[%s6 + $0x5d8] sm:$0xff]
    %v1092 = vld [vmem:[%s6 + $0x5e0] sm:$0xff]
    %v1093 = vld [vmem:[%s6 + $0x5e8] sm:$0xff]
    %v1094 = vld [vmem:[%s6 + $0x5f0] sm:$0xff]
    %v1095 = vld [vmem:[%s6 + $0x5f8] sm:$0xff]
    %v1096 = vld [vmem:[%s6 + $0x600] sm:$0xff]
    %v1097 = vld [vmem:[%s6 + $0x608] sm:$0xff]
    %v1098 = vld [vmem:[%s6 + $0x610] sm:$0xff]
    %v1099 = vld [vmem:[%s6 + $0x618] sm:$0xff]
    %v1100 = vld [vmem:[%s6 + $0x620] sm:$0xff]
    %v1101 = vld [vmem:[%s6 + $0x628] sm:$0xff]
    %v1102 = vld [vmem:[%s6 + $0x630] sm:$0xff]
    %v1103 = vld [vmem:[%s6 + $0x638] sm:$0xff]
    %v1104 = vld [vmem:[%s6 + $0x640] sm:$0xff]
    %v1105 = vld [vmem:[%s6 + $0x648] sm:$0xff]
    %v1106 = vld [vmem:[%s6 + $0x650] sm:$0xff]
    %v1107 = vld [vmem:[%s6 + $0x658] sm:$0xff]
    %v1108 = vld [vmem:[%s6 + $0x660] sm:$0xff]
    %v1109 = vld [vmem:[%s6 + $0x668] sm:$0xff]
    %v1110 = vld [vmem:[%s6 + $0x670] sm:$0xff]
    %v1111 = vld [vmem:[%s6 + $0x678] sm:$0xff]
    %v1112 = vld [vmem:[%s6 + $0x680] sm:$0xff]
    %v1113 = vld [vmem:[%s6 + $0x688] sm:$0xff]
    %v1114 = vld [vmem:[%s6 + $0x690] sm:$0xff]
    %v1115 = vld [vmem:[%s6 + $0x698] sm:$0xff]
    %v1116 = vld [vmem:[%s6 + $0x6a0] sm:$0xff]
    %v1117 = vld [vmem:[%s6 + $0x6a8] sm:$0xff]
    %v1118 = vld [vmem:[%s6 + $0x6b0] sm:$0xff]
    %v1119 = vld [vmem:[%s6 + $0x6b8] sm:$0xff]
    %v1120 = vld [vmem:[%s6 + $0x6c0] sm:$0xff]
    %v1121 = vld [vmem:[%s6 + $0x6c8] sm:$0xff]
    %v1122 = vld [vmem:[%s6 + $0x6d0] sm:$0xff]
    %v1123 = vld [vmem:[%s6 + $0x6d8] sm:$0xff]
    %v1124 = vld [vmem:[%s6 + $0x6e0] sm:$0xff]
    %v1125 = vld [vmem:[%s6 + $0x6e8] sm:$0xff]
    %v1126 = vld [vmem:[%s6 + $0x6f0] sm:$0xff]
    %v1127 = vld [vmem:[%s6 + $0x6f8] sm:$0xff]
    %v1128 = vld [vmem:[%s6 + $0x700] sm:$0xff]
    %v1129 = vld [vmem:[%s6 + $0x708] sm:$0xff]
    %v1130 = vld [vmem:[%s6 + $0x710] sm:$0xff]
    %v1131 = vld [vmem:[%s6 + $0x718] sm:$0xff]
    %v1132 = vld [vmem:[%s6 + $0x720] sm:$0xff]
    %v1133 = vld [vmem:[%s6 + $0x728] sm:$0xff]
    %v1134 = vld [vmem:[%s6 + $0x730] sm:$0xff]
    %v1135 = vld [vmem:[%s6 + $0x738] sm:$0xff]
    %v1136 = vld [vmem:[%s6 + $0x740] sm:$0xff]
    %v1137 = vld [vmem:[%s6 + $0x748] sm:$0xff]
    %v1138 = vld [vmem:[%s6 + $0x750] sm:$0xff]
    %v1139 = vld [vmem:[%s6 + $0x758] sm:$0xff]
    %v1140 = vld [vmem:[%s6 + $0x760] sm:$0xff]
    %v1141 = vld [vmem:[%s6 + $0x768] sm:$0xff]
    %v1142 = vld [vmem:[%s6 + $0x770] sm:$0xff]
    %v1143 = vld [vmem:[%s6 + $0x778] sm:$0xff]
    %v1144 = vld [vmem:[%s6 + $0x780] sm:$0xff]
    %v1145 = vld [vmem:[%s6 + $0x788] sm:$0xff]
    %v1146 = vld [vmem:[%s6 + $0x790] sm:$0xff]
    %v1147 = vld [vmem:[%s6 + $0x798] sm:$0xff]
    %v1148 = vld [vmem:[%s6 + $0x7a0] sm:$0xff]
    %v1149 = vld [vmem:[%s6 + $0x7a8] sm:$0xff]
    %v1150 = vld [vmem:[%s6 + $0x7b0] sm:$0xff]
    %v1151 = vld [vmem:[%s6 + $0x7b8] sm:$0xff]
    %v1152 = vld [vmem:[%s6 + $0x7c0] sm:$0xff]
    %v1153 = vld [vmem:[%s6 + $0x7c8] sm:$0xff]
    %v1154 = vld [vmem:[%s6 + $0x7d0] sm:$0xff]
    %v1155 = vld [vmem:[%s6 + $0x7d8] sm:$0xff]
    %v1156 = vld [vmem:[%s6 + $0x7e0] sm:$0xff]
    %v1157 = vld [vmem:[%s6 + $0x7e8] sm:$0xff]
    %v1158 = vld [vmem:[%s6 + $0x7f0] sm:$0xff]
    %v1159 = vld [vmem:[%s6 + $0x7f8] sm:$0xff]
    %v1160 = vld [vmem:[%s6 + $0x800] sm:$0xff]
    %v1161 = vld [vmem:[%s6 + $0x808] sm:$0xff]
    %v1162 = vld [vmem:[%s6 + $0x810] sm:$0xff]
    %v1163 = vld [vmem:[%s6 + $0x818] sm:$0xff]
    %v1164 = vld [vmem:[%s6 + $0x820] sm:$0xff]
    %v1165 = vld [vmem:[%s6 + $0x828] sm:$0xff]
    %v1166 = vld [vmem:[%s6 + $0x830] sm:$0xff]
    %v1167 = vld [vmem:[%s6 + $0x838] sm:$0xff]
    %v1168 = vld [vmem:[%s6 + $0x840] sm:$0xff]
    %v1169 = vld [vmem:[%s6 + $0x848] sm:$0xff]
    %v1170 = vld [vmem:[%s6 + $0x850] sm:$0xff]
    %v1171 = vld [vmem:[%s6 + $0x858] sm:$0xff]
    %v1172 = vld [vmem:[%s6 + $0x860] sm:$0xff]
    %v1173 = vld [vmem:[%s6 + $0x868] sm:$0xff]
    %v1174 = vld [vmem:[%s6 + $0x870] sm:$0xff]
    %v1175 = vld [vmem:[%s6 + $0x878] sm:$0xff]
    %v1176 = vld [vmem:[%s6 + $0x880] sm:$0xff]
    %v1177 = vld [vmem:[%s6 + $0x888] sm:$0xff]
    %v1178 = vld [vmem:[%s6 + $0x890] sm:$0xff]
    %v1179 = vld [vmem:[%s6 + $0x898] sm:$0xff]
    %v1180 = vld [vmem:[%s6 + $0x8a0] sm:$0xff]
    %v1181 = vld [vmem:[%s6 + $0x8a8] sm:$0xff]
    %v1182 = vld [vmem:[%s6 + $0x8b0] sm:$0xff]
    %v1183 = vld [vmem:[%s6 + $0x8b8] sm:$0xff]
    %v1184 = vld [vmem:[%s6 + $0x8c0] sm:$0xff]
    %v1185 = vld [vmem:[%s6 + $0x8c8] sm:$0xff]
    %v1186 = vld [vmem:[%s6 + $0x8d0] sm:$0xff]
    %v1187 = vld [vmem:[%s6 + $0x8d8] sm:$0xff]
    %v1188 = vld [vmem:[%s6 + $0x8e0] sm:$0xff]
    %v1189 = vld [vmem:[%s6 + $0x8e8] sm:$0xff]
    %v1190 = vld [vmem:[%s6 + $0x8f0] sm:$0xff]
    %v1191 = vld [vmem:[%s6 + $0x8f8] sm:$0xff]
    %v1192 = vld [vmem:[%s6 + $0x900] sm:$0xff]
    %v1193 = vld [vmem:[%s6 + $0x908] sm:$0xff]
    %v1194 = vld [vmem:[%s6 + $0x910] sm:$0xff]
    %v1195 = vld [vmem:[%s6 + $0x918] sm:$0xff]
    %v1196 = vld [vmem:[%s6 + $0x920] sm:$0xff]
    %v1197 = vld [vmem:[%s6 + $0x928] sm:$0xff]
    %v1198 = vld [vmem:[%s6 + $0x930] sm:$0xff]
    %v1199 = vld [vmem:[%s6 + $0x938] sm:$0xff]
    %v1200 = vld [vmem:[%s6 + $0x940] sm:$0xff]
    %v1201 = vld [vmem:[%s6 + $0x948] sm:$0xff]
    %v1202 = vld [vmem:[%s6 + $0x950] sm:$0xff]
    %v1203 = vld [vmem:[%s6 + $0x958] sm:$0xff]
    %v1204 = vld [vmem:[%s6 + $0x960] sm:$0xff]
    %v1205 = vld [vmem:[%s6 + $0x968] sm:$0xff]
    %v1206 = vld [vmem:[%s6 + $0x970] sm:$0xff]
    %v1207 = vld [vmem:[%s6 + $0x978] sm:$0xff]
    %v1208 = vld [vmem:[%s6 + $0x980] sm:$0xff]
    %v1209 = vld [vmem:[%s6 + $0x988] sm:$0xff]
    %v1210 = vld [vmem:[%s6 + $0x990] sm:$0xff]
    %v1211 = vld [vmem:[%s6 + $0x998] sm:$0xff]
    %v1212 = vld [vmem:[%s6 + $0x9a0] sm:$0xff]
    %v1213 = vld [vmem:[%s6 + $0x9a8] sm:$0xff]
    %v1214 = vld [vmem:[%s6 + $0x9b0] sm:$0xff]
    %v1215 = vld [vmem:[%s6 + $0x9b8] sm:$0xff]
    %v1216 = vld [vmem:[%s6 + $0x9c0] sm:$0xff]
    %v1217 = vld [vmem:[%s6 + $0x9c8] sm:$0xff]
    %v1218 = vld [vmem:[%s6 + $0x9d0] sm:$0xff]
    %v1219 = vld [vmem:[%s6 + $0x9d8] sm:$0xff]
    %v1220 = vld [vmem:[%s6 + $0x9e0] sm:$0xff]
    %v1221 = vld [vmem:[%s6 + $0x9e8] sm:$0xff]
    %v1222 = vld [vmem:[%s6 + $0x9f0] sm:$0xff]
    %v1223 = vld [vmem:[%s6 + $0x9f8] sm:$0xff]
    %v1224 = vld [vmem:[%s6 + $0xa00] sm:$0xff]
    %v1225 = vld [vmem:[%s6 + $0xa08] sm:$0xff]
    %v1226 = vld [vmem:[%s6 + $0xa10] sm:$0xff]
    %v1227 = vld [vmem:[%s6 + $0xa18] sm:$0xff]
    %v1228 = vld [vmem:[%s7] sm:$0x1]
    %v1230 = vperm.slane %v1228, 0
    %1238 = vst [vmem:[#allocation1] ss:$4 sm:$0xff] %v898
    %s1239 = scalar_lea.vmem [#allocation1], 32
    %1240 = vst [vmem:[%s1239] ss:$4 sm:$0xff] %v899
    %v1241 = vld.sshfl [vmem:[#allocation1] sm:$0xff pattern:$0x73625140]
    %v1242 = vld.sshfl [vmem:[#allocation1 + $0x8] sm:$0xff pattern:$0x73625140]
    %v1243 = vld.sshfl [vmem:[#allocation1 + $0x10] sm:$0xff pattern:$0x73625140]
    %v1244 = vld.sshfl [vmem:[#allocation1 + $0x18] sm:$0xff pattern:$0x73625140]
    %v1245 = vld.sshfl [vmem:[#allocation1 + $0x20] sm:$0xff pattern:$0x73625140]
    %v1246 = vld.sshfl [vmem:[#allocation1 + $0x28] sm:$0xff pattern:$0x73625140]
    %v1247 = vld.sshfl [vmem:[#allocation1 + $0x30] sm:$0xff pattern:$0x73625140]
    %v1248 = vld.sshfl [vmem:[#allocation1 + $0x38] sm:$0xff pattern:$0x73625140]
    %1249 = vst [vmem:[#allocation1] ss:$4 sm:$0xff] %v900
    %1250 = vst [vmem:[%s1239] ss:$4 sm:$0xff] %v901
    %v1251 = vld.sshfl [vmem:[#allocation1] sm:$0xff pattern:$0x73625140]
    %v1252 = vld.sshfl [vmem:[#allocation1 + $0x8] sm:$0xff pattern:$0x73625140]
    %v1253 = vld.sshfl [vmem:[#allocation1 + $0x10] sm:$0xff pattern:$0x73625140]
    %v1254 = vld.sshfl [vmem:[#allocation1 + $0x18] sm:$0xff pattern:$0x73625140]
    %v1255 = vld.sshfl [vmem:[#allocation1 + $0x20] sm:$0xff pattern:$0x73625140]
    %v1256 = vld.sshfl [vmem:[#allocation1 + $0x28] sm:$0xff pattern:$0x73625140]
    %v1257 = vld.sshfl [vmem:[#allocation1 + $0x30] sm:$0xff pattern:$0x73625140]
    %v1258 = vld.sshfl [vmem:[#allocation1 + $0x38] sm:$0xff pattern:$0x73625140]
    %1259 = vst [vmem:[#allocation1] ss:$4 sm:$0xff] %v902
    %1260 = vst [vmem:[%s1239] ss:$4 sm:$0xff] %v903
    %v1261 = vld.sshfl [vmem:[#allocation1] sm:$0xff pattern:$0x73625140]
    %v1262 = vld.sshfl [vmem:[#allocation1 + $0x8] sm:$0xff pattern:$0x73625140]
    %v1263 = vld.sshfl [vmem:[#allocation1 + $0x10] sm:$0xff pattern:$0x73625140]
    %v1264 = vld.sshfl [vmem:[#allocation1 + $0x18] sm:$0xff pattern:$0x73625140]
    %v1265 = vld.sshfl [vmem:[#allocation1 + $0x20] sm:$0xff pattern:$0x73625140]
    %vm1286 = vcmask 261120
    %v1287 = vsel %vm1286, %v1265, 0
    %1289 = vmatpush.msra.mxu0 %v919
    %1290 = vmatpush.msra.mxu0 %v918
    %1291 = vmatpush.msra.mxu0 %v917
    %1292 = vmatpush.msra.mxu0 %v916
    %1293 = vmatpush.msra.mxu0 %v915
    %1294 = vmatpush.msra.mxu0 %v914
    %1295 = vmatpush.msra.mxu0 %v913
    %1296 = vmatpush.msra.mxu0 %v912
    %1297 = vmatpush.msra.mxu0 %v911
    %1298 = vmatpush.msra.mxu0 %v910
    %1299 = vmatpush.msra.mxu0 %v909
    %1300 = vmatpush.msra.mxu0 %v908
    %1301 = vmatpush.msra.mxu0 %v907
    %1302 = vmatpush.msra.mxu0 %v906
    %1303 = vmatpush.msra.mxu0 %v905
    %1304 = vmatpush.msra.mxu0 %v904
    %1305 = vmatmul.f32.gmra.mxu0 %v1241
    %v1306 = vpop.f32.mrf.mxu0
    %v1307 = vadd.f32 %v1230, %v1306
    %1308 = vdwg.mxu0
    %1309 = vmatpush.msra.mxu0 %v935
    %1310 = vmatpush.msra.mxu0 %v934
    %1311 = vmatpush.msra.mxu0 %v933
    %1312 = vmatpush.msra.mxu0 %v932
    %1313 = vmatpush.msra.mxu0 %v931
    %1314 = vmatpush.msra.mxu0 %v930
    %1315 = vmatpush.msra.mxu0 %v929
    %1316 = vmatpush.msra.mxu0 %v928
    %1317 = vmatpush.msra.mxu0 %v927
    %1318 = vmatpush.msra.mxu0 %v926
    %1319 = vmatpush.msra.mxu0 %v925
    %1320 = vmatpush.msra.mxu0 %v924
    %1321 = vmatpush.msra.mxu0 %v923
    %1322 = vmatpush.msra.mxu0 %v922
    %1323 = vmatpush.msra.mxu0 %v921
    %1324 = vmatpush.msra.mxu0 %v920
    %1325 = vmatmul.f32.gmra.mxu0 %v1242
    %v1326 = vpop.f32.mrf.mxu0
    %v1327 = vadd.f32 %v1307, %v1326
    %1328 = vdwg.mxu0
    %1329 = vmatpush.msra.mxu0 %v951
    %1330 = vmatpush.msra.mxu0 %v950
    %1331 = vmatpush.msra.mxu0 %v949
    %1332 = vmatpush.msra.mxu0 %v948
    %1333 = vmatpush.msra.mxu0 %v947
    %1334 = vmatpush.msra.mxu0 %v946
    %1335 = vmatpush.msra.mxu0 %v945
    %1336 = vmatpush.msra.mxu0 %v944
    %1337 = vmatpush.msra.mxu0 %v943
    %1338 = vmatpush.msra.mxu0 %v942
    %1339 = vmatpush.msra.mxu0 %v941
    %1340 = vmatpush.msra.mxu0 %v940
    %1341 = vmatpush.msra.mxu0 %v939
    %1342 = vmatpush.msra.mxu0 %v938
    %1343 = vmatpush.msra.mxu0 %v937
    %1344 = vmatpush.msra.mxu0 %v936
    %1345 = vmatmul.f32.gmra.mxu0 %v1243
    %v1346 = vpop.f32.mrf.mxu0
    %v1347 = vadd.f32 %v1327, %v1346
    %1348 = vdwg.mxu0
    %1349 = vmatpush.msra.mxu0 %v967
    %1350 = vmatpush.msra.mxu0 %v966
    %1351 = vmatpush.msra.mxu0 %v965
    %1352 = vmatpush.msra.mxu0 %v964
    %1353 = vmatpush.msra.mxu0 %v963
    %1354 = vmatpush.msra.mxu0 %v962
    %1355 = vmatpush.msra.mxu0 %v961
    %1356 = vmatpush.msra.mxu0 %v960
    %1357 = vmatpush.msra.mxu0 %v959
    %1358 = vmatpush.msra.mxu0 %v958
    %1359 = vmatpush.msra.mxu0 %v957
    %1360 = vmatpush.msra.mxu0 %v956
    %1361 = vmatpush.msra.mxu0 %v955
    %1362 = vmatpush.msra.mxu0 %v954
    %1363 = vmatpush.msra.mxu0 %v953
    %1364 = vmatpush.msra.mxu0 %v952
    %1365 = vmatmul.f32.gmra.mxu0 %v1244
    %v1366 = vpop.f32.mrf.mxu0
    %v1367 = vadd.f32 %v1347, %v1366
    %1368 = vdwg.mxu0
    %1369 = vmatpush.msra.mxu0 %v983
    %1370 = vmatpush.msra.mxu0 %v982
    %1371 = vmatpush.msra.mxu0 %v981
    %1372 = vmatpush.msra.mxu0 %v980
    %1373 = vmatpush.msra.mxu0 %v979
    %1374 = vmatpush.msra.mxu0 %v978
    %1375 = vmatpush.msra.mxu0 %v977
    %1376 = vmatpush.msra.mxu0 %v976
    %1377 = vmatpush.msra.mxu0 %v975
    %1378 = vmatpush.msra.mxu0 %v974
    %1379 = vmatpush.msra.mxu0 %v973
    %1380 = vmatpush.msra.mxu0 %v972
    %1381 = vmatpush.msra.mxu0 %v971
    %1382 = vmatpush.msra.mxu0 %v970
    %1383 = vmatpush.msra.mxu0 %v969
    %1384 = vmatpush.msra.mxu0 %v968
    %1385 = vmatmul.f32.gmra.mxu0 %v1245
    %v1386 = vpop.f32.mrf.mxu0
    %v1387 = vadd.f32 %v1367, %v1386
    %1388 = vdwg.mxu0
    %1389 = vmatpush.msra.mxu0 %v999
    %1390 = vmatpush.msra.mxu0 %v998
    %1391 = vmatpush.msra.mxu0 %v997
    %1392 = vmatpush.msra.mxu0 %v996
    %1393 = vmatpush.msra.mxu0 %v995
    %1394 = vmatpush.msra.mxu0 %v994
    %1395 = vmatpush.msra.mxu0 %v993
    %1396 = vmatpush.msra.mxu0 %v992
    %1397 = vmatpush.msra.mxu0 %v991
    %1398 = vmatpush.msra.mxu0 %v990
    %1399 = vmatpush.msra.mxu0 %v989
    %1400 = vmatpush.msra.mxu0 %v988
    %1401 = vmatpush.msra.mxu0 %v987
    %1402 = vmatpush.msra.mxu0 %v986
    %1403 = vmatpush.msra.mxu0 %v985
    %1404 = vmatpush.msra.mxu0 %v984
    %1405 = vmatmul.f32.gmra.mxu0 %v1246
    %v1406 = vpop.f32.mrf.mxu0
    %v1407 = vadd.f32 %v1387, %v1406
    %1408 = vdwg.mxu0
    %1409 = vmatpush.msra.mxu0 %v1015
    %1410 = vmatpush.msra.mxu0 %v1014
    %1411 = vmatpush.msra.mxu0 %v1013
    %1412 = vmatpush.msra.mxu0 %v1012
    %1413 = vmatpush.msra.mxu0 %v1011
    %1414 = vmatpush.msra.mxu0 %v1010
    %1415 = vmatpush.msra.mxu0 %v1009
    %1416 = vmatpush.msra.mxu0 %v1008
    %1417 = vmatpush.msra.mxu0 %v1007
    %1418 = vmatpush.msra.mxu0 %v1006
    %1419 = vmatpush.msra.mxu0 %v1005
    %1420 = vmatpush.msra.mxu0 %v1004
    %1421 = vmatpush.msra.mxu0 %v1003
    %1422 = vmatpush.msra.mxu0 %v1002
    %1423 = vmatpush.msra.mxu0 %v1001
    %1424 = vmatpush.msra.mxu0 %v1000
    %1425 = vmatmul.f32.gmra.mxu0 %v1247
    %v1426 = vpop.f32.mrf.mxu0
    %v1427 = vadd.f32 %v1407, %v1426
    %1428 = vdwg.mxu0
    %1429 = vmatpush.msra.mxu0 %v1031
    %1430 = vmatpush.msra.mxu0 %v1030
    %1431 = vmatpush.msra.mxu0 %v1029
    %1432 = vmatpush.msra.mxu0 %v1028
    %1433 = vmatpush.msra.mxu0 %v1027
    %1434 = vmatpush.msra.mxu0 %v1026
    %1435 = vmatpush.msra.mxu0 %v1025
    %1436 = vmatpush.msra.mxu0 %v1024
    %1437 = vmatpush.msra.mxu0 %v1023
    %1438 = vmatpush.msra.mxu0 %v1022
    %1439 = vmatpush.msra.mxu0 %v1021
    %1440 = vmatpush.msra.mxu0 %v1020
    %1441 = vmatpush.msra.mxu0 %v1019
    %1442 = vmatpush.msra.mxu0 %v1018
    %1443 = vmatpush.msra.mxu0 %v1017
    %1444 = vmatpush.msra.mxu0 %v1016
    %1445 = vmatmul.f32.gmra.mxu0 %v1248
    %v1446 = vpop.f32.mrf.mxu0
    %v1447 = vadd.f32 %v1427, %v1446
    %1448 = vdwg.mxu0
    %1449 = vmatpush.msra.mxu0 %v1047
    %1450 = vmatpush.msra.mxu0 %v1046
    %1451 = vmatpush.msra.mxu0 %v1045
    %1452 = vmatpush.msra.mxu0 %v1044
    %1453 = vmatpush.msra.mxu0 %v1043
    %1454 = vmatpush.msra.mxu0 %v1042
    %1455 = vmatpush.msra.mxu0 %v1041
    %1456 = vmatpush.msra.mxu0 %v1040
    %1457 = vmatpush.msra.mxu0 %v1039
    %1458 = vmatpush.msra.mxu0 %v1038
    %1459 = vmatpush.msra.mxu0 %v1037
    %1460 = vmatpush.msra.mxu0 %v1036
    %1461 = vmatpush.msra.mxu0 %v1035
    %1462 = vmatpush.msra.mxu0 %v1034
    %1463 = vmatpush.msra.mxu0 %v1033
    %1464 = vmatpush.msra.mxu0 %v1032
    %1465 = vmatmul.f32.gmra.mxu0 %v1251
    %v1466 = vpop.f32.mrf.mxu0
    %v1467 = vadd.f32 %v1447, %v1466
    %1468 = vdwg.mxu0
    %1469 = vmatpush.msra.mxu0 %v1063
    %1470 = vmatpush.msra.mxu0 %v1062
    %1471 = vmatpush.msra.mxu0 %v1061
    %1472 = vmatpush.msra.mxu0 %v1060
    %1473 = vmatpush.msra.mxu0 %v1059
    %1474 = vmatpush.msra.mxu0 %v1058
    %1475 = vmatpush.msra.mxu0 %v1057
    %1476 = vmatpush.msra.mxu0 %v1056
    %1477 = vmatpush.msra.mxu0 %v1055
    %1478 = vmatpush.msra.mxu0 %v1054
    %1479 = vmatpush.msra.mxu0 %v1053
    %1480 = vmatpush.msra.mxu0 %v1052
    %1481 = vmatpush.msra.mxu0 %v1051
    %1482 = vmatpush.msra.mxu0 %v1050
    %1483 = vmatpush.msra.mxu0 %v1049
    %1484 = vmatpush.msra.mxu0 %v1048
    %1485 = vmatmul.f32.gmra.mxu0 %v1252
    %v1486 = vpop.f32.mrf.mxu0
    %v1487 = vadd.f32 %v1467, %v1486
    %1488 = vdwg.mxu0
    %1489 = vmatpush.msra.mxu0 %v1079
    %1490 = vmatpush.msra.mxu0 %v1078
    %1491 = vmatpush.msra.mxu0 %v1077
    %1492 = vmatpush.msra.mxu0 %v1076
    %1493 = vmatpush.msra.mxu0 %v1075
    %1494 = vmatpush.msra.mxu0 %v1074
    %1495 = vmatpush.msra.mxu0 %v1073
    %1496 = vmatpush.msra.mxu0 %v1072
    %1497 = vmatpush.msra.mxu0 %v1071
    %1498 = vmatpush.msra.mxu0 %v1070
    %1499 = vmatpush.msra.mxu0 %v1069
    %1500 = vmatpush.msra.mxu0 %v1068
    %1501 = vmatpush.msra.mxu0 %v1067
    %1502 = vmatpush.msra.mxu0 %v1066
    %1503 = vmatpush.msra.mxu0 %v1065
    %1504 = vmatpush.msra.mxu0 %v1064
    %1505 = vmatmul.f32.gmra.mxu0 %v1253
    %v1506 = vpop.f32.mrf.mxu0
    %v1507 = vadd.f32 %v1487, %v1506
    %1508 = vdwg.mxu0
    %1509 = vmatpush.msra.mxu0 %v1095
    %1510 = vmatpush.msra.mxu0 %v1094
    %1511 = vmatpush.msra.mxu0 %v1093
    %1512 = vmatpush.msra.mxu0 %v1092
    %1513 = vmatpush.msra.mxu0 %v1091
    %1514 = vmatpush.msra.mxu0 %v1090
    %1515 = vmatpush.msra.mxu0 %v1089
    %1516 = vmatpush.msra.mxu0 %v1088
    %1517 = vmatpush.msra.mxu0 %v1087
    %1518 = vmatpush.msra.mxu0 %v1086
    %1519 = vmatpush.msra.mxu0 %v1085
    %1520 = vmatpush.msra.mxu0 %v1084
    %1521 = vmatpush.msra.mxu0 %v1083
    %1522 = vmatpush.msra.mxu0 %v1082
    %1523 = vmatpush.msra.mxu0 %v1081
    %1524 = vmatpush.msra.mxu0 %v1080
    %1525 = vmatmul.f32.gmra.mxu0 %v1254
    %v1526 = vpop.f32.mrf.mxu0
    %v1527 = vadd.f32 %v1507, %v1526
    %1528 = vdwg.mxu0
    %1529 = vmatpush.msra.mxu0 %v1111
    %1530 = vmatpush.msra.mxu0 %v1110
    %1531 = vmatpush.msra.mxu0 %v1109
    %1532 = vmatpush.msra.mxu0 %v1108
    %1533 = vmatpush.msra.mxu0 %v1107
    %1534 = vmatpush.msra.mxu0 %v1106
    %1535 = vmatpush.msra.mxu0 %v1105
    %1536 = vmatpush.msra.mxu0 %v1104
    %1537 = vmatpush.msra.mxu0 %v1103
    %1538 = vmatpush.msra.mxu0 %v1102
    %1539 = vmatpush.msra.mxu0 %v1101
    %1540 = vmatpush.msra.mxu0 %v1100
    %1541 = vmatpush.msra.mxu0 %v1099
    %1542 = vmatpush.msra.mxu0 %v1098
    %1543 = vmatpush.msra.mxu0 %v1097
    %1544 = vmatpush.msra.mxu0 %v1096
    %1545 = vmatmul.f32.gmra.mxu0 %v1255
    %v1546 = vpop.f32.mrf.mxu0
    %v1547 = vadd.f32 %v1527, %v1546
    %1548 = vdwg.mxu0
    %1549 = vmatpush.msra.mxu0 %v1127
    %1550 = vmatpush.msra.mxu0 %v1126
    %1551 = vmatpush.msra.mxu0 %v1125
    %1552 = vmatpush.msra.mxu0 %v1124
    %1553 = vmatpush.msra.mxu0 %v1123
    %1554 = vmatpush.msra.mxu0 %v1122
    %1555 = vmatpush.msra.mxu0 %v1121
    %1556 = vmatpush.msra.mxu0 %v1120
    %1557 = vmatpush.msra.mxu0 %v1119
    %1558 = vmatpush.msra.mxu0 %v1118
    %1559 = vmatpush.msra.mxu0 %v1117
    %1560 = vmatpush.msra.mxu0 %v1116
    %1561 = vmatpush.msra.mxu0 %v1115
    %1562 = vmatpush.msra.mxu0 %v1114
    %1563 = vmatpush.msra.mxu0 %v1113
    %1564 = vmatpush.msra.mxu0 %v1112
    %1565 = vmatmul.f32.gmra.mxu0 %v1256
    %v1566 = vpop.f32.mrf.mxu0
    %v1567 = vadd.f32 %v1547, %v1566
    %1568 = vdwg.mxu0
    %1569 = vmatpush.msra.mxu0 %v1143
    %1570 = vmatpush.msra.mxu0 %v1142
    %1571 = vmatpush.msra.mxu0 %v1141
    %1572 = vmatpush.msra.mxu0 %v1140
    %1573 = vmatpush.msra.mxu0 %v1139
    %1574 = vmatpush.msra.mxu0 %v1138
    %1575 = vmatpush.msra.mxu0 %v1137
    %1576 = vmatpush.msra.mxu0 %v1136
    %1577 = vmatpush.msra.mxu0 %v1135
    %1578 = vmatpush.msra.mxu0 %v1134
    %1579 = vmatpush.msra.mxu0 %v1133
    %1580 = vmatpush.msra.mxu0 %v1132
    %1581 = vmatpush.msra.mxu0 %v1131
    %1582 = vmatpush.msra.mxu0 %v1130
    %1583 = vmatpush.msra.mxu0 %v1129
    %1584 = vmatpush.msra.mxu0 %v1128
    %1585 = vmatmul.f32.gmra.mxu0 %v1257
    %v1586 = vpop.f32.mrf.mxu0
    %v1587 = vadd.f32 %v1567, %v1586
    %1588 = vdwg.mxu0
    %1589 = vmatpush.msra.mxu0 %v1159
    %1590 = vmatpush.msra.mxu0 %v1158
    %1591 = vmatpush.msra.mxu0 %v1157
    %1592 = vmatpush.msra.mxu0 %v1156
    %1593 = vmatpush.msra.mxu0 %v1155
    %1594 = vmatpush.msra.mxu0 %v1154
    %1595 = vmatpush.msra.mxu0 %v1153
    %1596 = vmatpush.msra.mxu0 %v1152
    %1597 = vmatpush.msra.mxu0 %v1151
    %1598 = vmatpush.msra.mxu0 %v1150
    %1599 = vmatpush.msra.mxu0 %v1149
    %1600 = vmatpush.msra.mxu0 %v1148
    %1601 = vmatpush.msra.mxu0 %v1147
    %1602 = vmatpush.msra.mxu0 %v1146
    %1603 = vmatpush.msra.mxu0 %v1145
    %1604 = vmatpush.msra.mxu0 %v1144
    %1605 = vmatmul.f32.gmra.mxu0 %v1258
    %v1606 = vpop.f32.mrf.mxu0
    %v1607 = vadd.f32 %v1587, %v1606
    %1608 = vdwg.mxu0
    %1609 = vmatpush.msra.mxu0 %v1175
    %1610 = vmatpush.msra.mxu0 %v1174
    %1611 = vmatpush.msra.mxu0 %v1173
    %1612 = vmatpush.msra.mxu0 %v1172
    %1613 = vmatpush.msra.mxu0 %v1171
    %1614 = vmatpush.msra.mxu0 %v1170
    %1615 = vmatpush.msra.mxu0 %v1169
    %1616 = vmatpush.msra.mxu0 %v1168
    %1617 = vmatpush.msra.mxu0 %v1167
    %1618 = vmatpush.msra.mxu0 %v1166
    %1619 = vmatpush.msra.mxu0 %v1165
    %1620 = vmatpush.msra.mxu0 %v1164
    %1621 = vmatpush.msra.mxu0 %v1163
    %1622 = vmatpush.msra.mxu0 %v1162
    %1623 = vmatpush.msra.mxu0 %v1161
    %1624 = vmatpush.msra.mxu0 %v1160
    %1625 = vmatmul.f32.gmra.mxu0 %v1261
    %v1626 = vpop.f32.mrf.mxu0
    %v1627 = vadd.f32 %v1607, %v1626
    %1628 = vdwg.mxu0
    %1629 = vmatpush.msra.mxu0 %v1191
    %1630 = vmatpush.msra.mxu0 %v1190
    %1631 = vmatpush.msra.mxu0 %v1189
    %1632 = vmatpush.msra.mxu0 %v1188
    %1633 = vmatpush.msra.mxu0 %v1187
    %1634 = vmatpush.msra.mxu0 %v1186
    %1635 = vmatpush.msra.mxu0 %v1185
    %1636 = vmatpush.msra.mxu0 %v1184
    %1637 = vmatpush.msra.mxu0 %v1183
    %1638 = vmatpush.msra.mxu0 %v1182
    %1639 = vmatpush.msra.mxu0 %v1181
    %1640 = vmatpush.msra.mxu0 %v1180
    %1641 = vmatpush.msra.mxu0 %v1179
    %1642 = vmatpush.msra.mxu0 %v1178
    %1643 = vmatpush.msra.mxu0 %v1177
    %1644 = vmatpush.msra.mxu0 %v1176
    %1645 = vmatmul.f32.gmra.mxu0 %v1262
    %v1646 = vpop.f32.mrf.mxu0
    %v1647 = vadd.f32 %v1627, %v1646
    %1648 = vdwg.mxu0
    %1649 = vmatpush.msra.mxu0 %v1207
    %1650 = vmatpush.msra.mxu0 %v1206
    %1651 = vmatpush.msra.mxu0 %v1205
    %1652 = vmatpush.msra.mxu0 %v1204
    %1653 = vmatpush.msra.mxu0 %v1203
    %1654 = vmatpush.msra.mxu0 %v1202
    %1655 = vmatpush.msra.mxu0 %v1201
    %1656 = vmatpush.msra.mxu0 %v1200
    %1657 = vmatpush.msra.mxu0 %v1199
    %1658 = vmatpush.msra.mxu0 %v1198
    %1659 = vmatpush.msra.mxu0 %v1197
    %1660 = vmatpush.msra.mxu0 %v1196
    %1661 = vmatpush.msra.mxu0 %v1195
    %1662 = vmatpush.msra.mxu0 %v1194
    %1663 = vmatpush.msra.mxu0 %v1193
    %1664 = vmatpush.msra.mxu0 %v1192
    %1665 = vmatmul.f32.gmra.mxu0 %v1263
    %v1666 = vpop.f32.mrf.mxu0
    %v1667 = vadd.f32 %v1647, %v1666
    %1668 = vdwg.mxu0
    %1669 = vmatpush.msra.mxu0 %v1223
    %1670 = vmatpush.msra.mxu0 %v1222
    %1671 = vmatpush.msra.mxu0 %v1221
    %1672 = vmatpush.msra.mxu0 %v1220
    %1673 = vmatpush.msra.mxu0 %v1219
    %1674 = vmatpush.msra.mxu0 %v1218
    %1675 = vmatpush.msra.mxu0 %v1217
    %1676 = vmatpush.msra.mxu0 %v1216
    %1677 = vmatpush.msra.mxu0 %v1215
    %1678 = vmatpush.msra.mxu0 %v1214
    %1679 = vmatpush.msra.mxu0 %v1213
    %1680 = vmatpush.msra.mxu0 %v1212
    %1681 = vmatpush.msra.mxu0 %v1211
    %1682 = vmatpush.msra.mxu0 %v1210
    %1683 = vmatpush.msra.mxu0 %v1209
    %1684 = vmatpush.msra.mxu0 %v1208
    %1685 = vmatmul.f32.gmra.mxu0 %v1264
    %v1686 = vpop.f32.mrf.mxu0
    %v1687 = vadd.f32 %v1667, %v1686
    %1688 = vdwg.mxu0
    %1689 = vmatpush.msra.mxu0 0.0
    %1690 = vmatpush.msra.mxu0 0.0
    %1691 = vmatpush.msra.mxu0 0.0
    %1692 = vmatpush.msra.mxu0 0.0
    %1693 = vmatpush.msra.mxu0 0.0
    %1694 = vmatpush.msra.mxu0 0.0
    %1695 = vmatpush.msra.mxu0 0.0
    %1696 = vmatpush.msra.mxu0 0.0
    %1697 = vmatpush.msra.mxu0 0.0
    %1698 = vmatpush.msra.mxu0 0.0
    %1699 = vmatpush.msra.mxu0 0.0
    %1700 = vmatpush.msra.mxu0 0.0
    %1701 = vmatpush.msra.mxu0 %v1227
    %1702 = vmatpush.msra.mxu0 %v1226
    %1703 = vmatpush.msra.mxu0 %v1225
    %1704 = vmatpush.msra.mxu0 %v1224
    %1705 = vmatmul.f32.gmra.mxu0 %v1287
    %v1706 = vpop.f32.mrf.mxu0
    %v1707 = vadd.f32 %v1687, %v1706
    %1708 = vdwg.mxu0
    %v1709 = vmax.f32 %v1707, 0.0
    %v1710 = vld [vmem:[%s8] sm:$0xff]
    %v1711 = vld [vmem:[%s8 + $0x8] sm:$0xff]
    %v1712 = vld [vmem:[%s8 + $0x10] sm:$0xff]
    %v1713 = vld [vmem:[%s8 + $0x18] sm:$0xff]
    %v1714 = vld [vmem:[%s9] sm:$0x1]
    %v1716 = vperm.slane %v1714, 0
    %v1719 = vsel %vm1286, %v1709, 0
    %1721 = vmatpush.msra.mxu0 0.0
    %1722 = vmatpush.msra.mxu0 0.0
    %1723 = vmatpush.msra.mxu0 0.0
    %1724 = vmatpush.msra.mxu0 0.0
    %1725 = vmatpush.msra.mxu0 0.0
    %1726 = vmatpush.msra.mxu0 0.0
    %1727 = vmatpush.msra.mxu0 0.0
    %1728 = vmatpush.msra.mxu0 0.0
    %1729 = vmatpush.msra.mxu0 0.0
    %1730 = vmatpush.msra.mxu0 0.0
    %1731 = vmatpush.msra.mxu0 0.0
    %1732 = vmatpush.msra.mxu0 0.0
    %1733 = vmatpush.msra.mxu0 %v1713
    %1734 = vmatpush.msra.mxu0 %v1712
    %1735 = vmatpush.msra.mxu0 %v1711
    %1736 = vmatpush.msra.mxu0 %v1710
    %1737 = vmatmul.f32.gmra.mxu0 %v1719
    %v1738 = vpop.f32.mrf.mxu0
    %v1739 = vadd.f32 %v1716, %v1738
    %1740 = vdwg.mxu0
    %1741 = vst [vmem:[#allocation5] sm:$0x3] %v1739
    // Predicated region
    $region42: #{cnn_forward.1} parent=1 // pred_check
      _
    $region43: #{cnn_forward.1} parent=1 // pred_check_branch
      %1743 = sbr.rel (0) target = $region45
    $region44: #{cnn_forward.1} parent=1 // pred_region
      %1745 = vsyncadd [#allocation6], 0
      %s1747 = sshll.u32 [#allocation5], 4
      %s1748 = int_to_ptr.vmem [resolvable:$true] %s1747
      %s1749 = sshll.u32 %s10, 4
      %s1750 = int_to_ptr.hbm [resolvable:$true] %s1749
      %1752 = dma.vmem_to_hbm [thread:$0]  %s1748, 32, %s1750, [#allocation6]
    $region45: #{cnn_forward.1} parent=1 // pred_fallthru
      _
    // Predicated region
    $region46: #{cnn_forward.1} parent=1 // pred_check
      _
    $region47: #{cnn_forward.1} parent=1 // pred_check_branch
      %1754 = sbr.rel (0) target = $region49
    $region48: #{cnn_forward.1} parent=1 // pred_region
      %1756 = dma.done [#allocation6], 32
    $region49: #{cnn_forward.1} parent=1 // pred_fallthru
      _
    %1757 = vsyncpa [#allocation6], 1

</llo_original>
